<compile_context>
chip_gen: v7x
topology: tpu7x:2x2x1
jax: 0.10.0
libtpu: 0.0.40
codegen_flags: <defaults>
</compile_context>

<pallas_src>
import functools

import jax
import jax.numpy as jnp
import numpy as np
from jax import lax
from jax.experimental import pallas as pl
from jax.experimental.pallas import tpu as pltpu


# ---------------------------------------------------------------------------
# Pallas kernel: encoder -> GRU (unrolled scan over T) -> output projection
# ---------------------------------------------------------------------------
def _rnn_predictor_kernel(
    x_ref,                 # (T*B, F)   time-major, flattened
    w1t_ref, b1_ref,       # encoder Linear 1: (F, E), (1, E)    (pre-transposed)
    w2t_ref, b2_ref,       # encoder Linear 2: (E, E), (1, E)
    wiht_ref, bih_ref,     # GRU input weights : (E, 3H), (1, 3H)
    whht_ref, bhh_ref,     # GRU hidden weights: (H, 3H), (1, 3H)
    wot_ref, bo_ref,       # output Linear (lane-padded): (H, O_pad), (1, O_pad)
    out_ref,               # (T*B, O_pad)  time-major, flattened, lane-dense
    *,
    seq_len: int,
    batch: int,
):
    T, B = seq_len, batch
    H = whht_ref.shape[0]

    # ---------------- encoder: Linear -> Linear -> ELU -----------------------
    x = x_ref[...]                                                     # (T*B, F)
    e = jnp.dot(x, w1t_ref[...], preferred_element_type=jnp.float32) + b1_ref[...]
    e = jnp.dot(e, w2t_ref[...], preferred_element_type=jnp.float32) + b2_ref[...]
    # ELU (alpha = 1.0)
    e = jnp.where(e > 0, e, jnp.exp(jnp.minimum(e, 0.0)) - 1.0)

    # ---------------- GRU: bulk input-gate projection -------------------------
    # xg[t*B + b, :] = W_ih @ e[t, b] + b_ih   (time-major rows, all T at once)
    xg = jnp.dot(e, wiht_ref[...], preferred_element_type=jnp.float32) + bih_ref[...]

    # Gate slices hoisted out of the serial recurrence.
    xg_rz = xg[:, : 2 * H]            # reset + update gates (prefix slice)
    xg_n = xg[:, 2 * H:]              # candidate gate

    whht = whht_ref[...]                                               # (H, 3H)
    # Hoisted: JAX re-emits broadcast_in_dim per unrolled iteration otherwise.
    bhh_b = jnp.broadcast_to(bhh_ref[...], (B, 3 * H))

    # ---------------- recurrence, fully unrolled (static T) -------------------
    h = jnp.zeros((B, H), jnp.float32)
    hs = []
    for t in range(T):                 # static Python unroll; t is static
        lo, hi = t * B, (t + 1) * B
        g_h = jnp.dot(h, whht, preferred_element_type=jnp.float32) + bhh_b
        # single sigmoid for r and z (one EUP push instead of two)
        rz = jax.nn.sigmoid(xg_rz[lo:hi] + g_h[:, : 2 * H])
        r = rz[:, :H]
        z = rz[:, H:]
        n = jnp.tanh(xg_n[lo:hi] + r * g_h[:, 2 * H:])
        h = n + z * (h - n)            # == (1 - z) * n + z * h
        hs.append(h)

    # ---------------- output projection + single lane-dense store -------------
    hseq = jnp.concatenate(hs, axis=0)                                 # (T*B, H)
    out = jnp.dot(hseq, wot_ref[...], preferred_element_type=jnp.float32) + bo_ref[...]
    out_ref[...] = out.astype(out_ref.dtype)


# ---------------------------------------------------------------------------
# Wrapper: layout plumbing (transpose / reshape / weight transpose / padding)
# ---------------------------------------------------------------------------
def rnn_predictor_forward(x, params):
    """x: (B, T, F) float32. params: dict of weights (see init_params)."""
    B, T, F = x.shape
    H = params["w_hh"].shape[1]
    O = params["w_out"].shape[0]

    # Time-major, flattened input: row t*B + b  <->  x[b, t].
    x_tm = jnp.swapaxes(x, 0, 1).reshape(T * B, F)

    # Lane-pad the output projection so the kernel's final store is unmasked.
    O_pad = O + (-O) % 128
    w_out_t = jnp.pad(params["w_out"].T, ((0, 0), (0, O_pad - O)))      # (H, O_pad)
    b_out_p = jnp.pad(params["b_out"], ((0, 0), (0, O_pad - O)))        # (1, O_pad)

    args = (
        x_tm,
        params["w1"].T, params["b1"],
        params["w2"].T, params["b2"],
        params["w_ih"].T, params["b_ih"],
        params["w_hh"].T, params["b_hh"],
        w_out_t, b_out_p,
    )
    vmem_spec = pl.BlockSpec(memory_space=pltpu.MemorySpace.VMEM)
    kernel = functools.partial(_rnn_predictor_kernel, seq_len=T, batch=B)

    out_flat = pl.pallas_call(
        kernel,
        out_shape=jax.ShapeDtypeStruct((T * B, O_pad), jnp.float32),
        in_specs=[vmem_spec] * len(args),
        out_specs=vmem_spec,
        compiler_params=pltpu.CompilerParams(vmem_limit_bytes=32 * 1024 * 1024),
    )(*args)

    # Strip lane padding, back to batch-first (B, T, O).
    out_flat = out_flat[:, :O]
    return jnp.swapaxes(out_flat.reshape(T, B, O), 0, 1)


# ---------------------------------------------------------------------------
# Deterministic parameter init (PyTorch-style uniform fan-in init)
# ---------------------------------------------------------------------------
def init_params(key, input_dim, output_dim, encode_dim, rnn_hidden_dim):
    def lin(key, out_f, in_f):
        kw, kb = jax.random.split(key)
        bound = 1.0 / np.sqrt(in_f)
        w = jax.random.uniform(kw, (out_f, in_f), jnp.float32, -bound, bound)
        b = jax.random.uniform(kb, (1, out_f), jnp.float32, -bound, bound)
        return w, b

    k = jax.random.split(key, 6)
    w1, b1 = lin(k[0], encode_dim, input_dim)
    w2, b2 = lin(k[1], encode_dim, encode_dim)
    bound = 1.0 / np.sqrt(rnn_hidden_dim)
    w_ih = jax.random.uniform(k[2], (3 * rnn_hidden_dim, encode_dim), jnp.float32, -bound, bound)
    w_hh = jax.random.uniform(k[3], (3 * rnn_hidden_dim, rnn_hidden_dim), jnp.float32, -bound, bound)
    b_ih = jax.random.uniform(k[4], (1, 3 * rnn_hidden_dim), jnp.float32, -bound, bound)
    b_hh = jax.random.uniform(k[5], (1, 3 * rnn_hidden_dim), jnp.float32, -bound, bound)
    w_out, b_out = lin(jax.random.fold_in(key, 7), output_dim, rnn_hidden_dim)
    return dict(w1=w1, b1=b1, w2=w2, b2=b2,
                w_ih=w_ih, b_ih=b_ih, w_hh=w_hh, b_hh=b_hh,
                w_out=w_out, b_out=b_out)


# ---------------------------------------------------------------------------
# Pure-JAX reference (mirrors the PyTorch forward) for correctness check
# ---------------------------------------------------------------------------
def reference_forward(x, p):
    B, T, F = x.shape
    H = p["w_hh"].shape[1]
    e = x @ p["w1"].T + p["b1"]
    e = e @ p["w2"].T + p["b2"]
    e = jnp.where(e > 0, e, jnp.exp(jnp.minimum(e, 0.0)) - 1.0)

    def step(h, x_t):
        g_x = x_t @ p["w_ih"].T + p["b_ih"][0]
        g_h = h @ p["w_hh"].T + p["b_hh"][0]
        r = jax.nn.sigmoid(g_x[:, :H] + g_h[:, :H])
        z = jax.nn.sigmoid(g_x[:, H:2 * H] + g_h[:, H:2 * H])
        n = jnp.tanh(g_x[:, 2 * H:] + r * g_h[:, 2 * H:])
        h_new = (1.0 - z) * n + z * h
        return h_new, h_new

    h0 = jnp.zeros((B, H), jnp.float32)
    _, hs = lax.scan(step, h0, jnp.swapaxes(e, 0, 1))   # (T, B, H)
    hidden = jnp.swapaxes(hs, 0, 1)                     # (B, T, H)
    return hidden @ p["w_out"].T + p["b_out"]


if __name__ == "__main__":
    # Small shapes consistent with the module's forward: (batch, seq, feature)
    B, T = 2, 8
    input_dim, encode_dim, rnn_hidden_dim, output_dim = 4, 8, 16, 3

    key = jax.random.PRNGKey(0)
    kx, kp = jax.random.split(key)
    x = jax.random.normal(kx, (B, T, input_dim), jnp.float32)
    params = init_params(kp, input_dim, output_dim, encode_dim, rnn_hidden_dim)

    out = rnn_predictor_forward(x, params)
    out = jax.block_until_ready(out)

    ref = jax.block_until_ready(reference_forward(x, params))
    assert out.shape == (B, T, output_dim)
    np.testing.assert_allclose(np.asarray(out), np.asarray(ref), rtol=1e-4, atol=1e-4)

    print("KERNEL_OK")
</pallas_src>

<mosaic_0001>
module attributes {stable_mosaic.version = 11 : i64} {
  func.func @_rnn_predictor_kernel(%arg0: memref<16x4xf32, #tpu.memory_space<vmem>>, %arg1: memref<4x8xf32, #tpu.memory_space<vmem>>, %arg2: memref<1x8xf32, #tpu.memory_space<vmem>>, %arg3: memref<8x8xf32, #tpu.memory_space<vmem>>, %arg4: memref<1x8xf32, #tpu.memory_space<vmem>>, %arg5: memref<8x48xf32, #tpu.memory_space<vmem>>, %arg6: memref<1x48xf32, #tpu.memory_space<vmem>>, %arg7: memref<16x48xf32, #tpu.memory_space<vmem>>, %arg8: memref<1x48xf32, #tpu.memory_space<vmem>>, %arg9: memref<16x128xf32, #tpu.memory_space<vmem>>, %arg10: memref<1x128xf32, #tpu.memory_space<vmem>>, %arg11: memref<16x128xf32, #tpu.memory_space<vmem>>) attributes {dimension_semantics = [], scalar_prefetch = 0 : i64, scratch_operands = 0 : i64, tpu.core_type = #tpu.core_type<tc>} {
    %c0 = arith.constant 0 : index
    %c0_0 = arith.constant 0 : index
    %0 = vector.load %arg0[%c0, %c0_0] : memref<16x4xf32, #tpu.memory_space<vmem>>, vector<16x4xf32>
    %c0_1 = arith.constant 0 : index
    %c0_2 = arith.constant 0 : index
    %1 = vector.load %arg1[%c0_1, %c0_2] : memref<4x8xf32, #tpu.memory_space<vmem>>, vector<4x8xf32>
    %cst = arith.constant dense<0.000000e+00> : vector<16x8xf32>
    %2 = tpu.matmul %0, %1, %cst {dimension_numbers = #tpu.dot_dimension_numbers<[1], [0], [0], [1], [0, 0, 1, 1], [], []>} : vector<16x4xf32>, vector<4x8xf32>, vector<16x8xf32> -> vector<16x8xf32>
    %c0_3 = arith.constant 0 : index
    %c0_4 = arith.constant 0 : index
    %3 = vector.load %arg2[%c0_3, %c0_4] : memref<1x8xf32, #tpu.memory_space<vmem>>, vector<1x8xf32>
    %4 = vector.broadcast %3 : vector<1x8xf32> to vector<16x8xf32>
    %5 = arith.addf %2, %4 : vector<16x8xf32>
    %c0_5 = arith.constant 0 : index
    %c0_6 = arith.constant 0 : index
    %6 = vector.load %arg3[%c0_5, %c0_6] : memref<8x8xf32, #tpu.memory_space<vmem>>, vector<8x8xf32>
    %cst_7 = arith.constant dense<0.000000e+00> : vector<16x8xf32>
    %7 = tpu.matmul %5, %6, %cst_7 {dimension_numbers = #tpu.dot_dimension_numbers<[1], [0], [0], [1], [0, 0, 1, 1], [], []>} : vector<16x8xf32>, vector<8x8xf32>, vector<16x8xf32> -> vector<16x8xf32>
    %c0_8 = arith.constant 0 : index
    %c0_9 = arith.constant 0 : index
    %8 = vector.load %arg4[%c0_8, %c0_9] : memref<1x8xf32, #tpu.memory_space<vmem>>, vector<1x8xf32>
    %9 = vector.broadcast %8 : vector<1x8xf32> to vector<16x8xf32>
    %10 = arith.addf %7, %9 : vector<16x8xf32>
    %cst_10 = arith.constant 0.000000e+00 : f32
    %11 = vector.broadcast %cst_10 : f32 to vector<16x8xf32>
    %12 = arith.cmpf ogt, %10, %11 : vector<16x8xf32>
    %cst_11 = arith.constant 0.000000e+00 : f32
    %13 = vector.broadcast %cst_11 : f32 to vector<16x8xf32>
    %14 = arith.minimumf %10, %13 : vector<16x8xf32>
    %15 = math.exp %14 : vector<16x8xf32>
    %cst_12 = arith.constant 1.000000e+00 : f32
    %16 = vector.broadcast %cst_12 : f32 to vector<16x8xf32>
    %17 = arith.subf %15, %16 : vector<16x8xf32>
    %18 = arith.select %12, %10, %17 : vector<16x8xi1>, vector<16x8xf32>
    %c0_13 = arith.constant 0 : index
    %c0_14 = arith.constant 0 : index
    %19 = vector.load %arg5[%c0_13, %c0_14] : memref<8x48xf32, #tpu.memory_space<vmem>>, vector<8x48xf32>
    %cst_15 = arith.constant dense<0.000000e+00> : vector<16x48xf32>
    %20 = tpu.matmul %18, %19, %cst_15 {dimension_numbers = #tpu.dot_dimension_numbers<[1], [0], [0], [1], [0, 0, 1, 1], [], []>} : vector<16x8xf32>, vector<8x48xf32>, vector<16x48xf32> -> vector<16x48xf32>
    %c0_16 = arith.constant 0 : index
    %c0_17 = arith.constant 0 : index
    %21 = vector.load %arg6[%c0_16, %c0_17] : memref<1x48xf32, #tpu.memory_space<vmem>>, vector<1x48xf32>
    %22 = vector.broadcast %21 : vector<1x48xf32> to vector<16x48xf32>
    %23 = arith.addf %20, %22 : vector<16x48xf32>
    %24 = vector.extract_strided_slice %23 {offsets = [0, 0], sizes = [16, 32], strides = [1, 1]} : vector<16x48xf32> to vector<16x32xf32>
    %25 = vector.extract_strided_slice %23 {offsets = [0, 32], sizes = [16, 16], strides = [1, 1]} : vector<16x48xf32> to vector<16x16xf32>
    %c0_18 = arith.constant 0 : index
    %c0_19 = arith.constant 0 : index
    %26 = vector.load %arg7[%c0_18, %c0_19] : memref<16x48xf32, #tpu.memory_space<vmem>>, vector<16x48xf32>
    %c0_20 = arith.constant 0 : index
    %c0_21 = arith.constant 0 : index
    %27 = vector.load %arg8[%c0_20, %c0_21] : memref<1x48xf32, #tpu.memory_space<vmem>>, vector<1x48xf32>
    %28 = vector.shape_cast %27 : vector<1x48xf32> to vector<1x48xf32>
    %29 = vector.broadcast %28 : vector<1x48xf32> to vector<2x48xf32>
    %cst_22 = arith.constant 0.000000e+00 : f32
    %30 = vector.broadcast %cst_22 : f32 to vector<2x16xf32>
    %cst_23 = arith.constant dense<0.000000e+00> : vector<2x48xf32>
    %31 = tpu.matmul %30, %26, %cst_23 {dimension_numbers = #tpu.dot_dimension_numbers<[1], [0], [0], [1], [0, 0, 1, 1], [], []>} : vector<2x16xf32>, vector<16x48xf32>, vector<2x48xf32> -> vector<2x48xf32>
    %32 = arith.addf %31, %29 : vector<2x48xf32>
    %33 = vector.extract_strided_slice %24 {offsets = [0, 0], sizes = [2, 32], strides = [1, 1]} : vector<16x32xf32> to vector<2x32xf32>
    %34 = vector.extract_strided_slice %32 {offsets = [0, 0], sizes = [2, 32], strides = [1, 1]} : vector<2x48xf32> to vector<2x32xf32>
    %35 = arith.addf %33, %34 : vector<2x32xf32>
    %36 = arith.negf %35 : vector<2x32xf32>
    %37 = math.exp %36 : vector<2x32xf32>
    %cst_24 = arith.constant 1.000000e+00 : f32
    %38 = vector.broadcast %cst_24 : f32 to vector<2x32xf32>
    %39 = arith.addf %38, %37 : vector<2x32xf32>
    %40 = arith.divf %38, %39 : vector<2x32xf32>
    %41 = vector.extract_strided_slice %40 {offsets = [0, 0], sizes = [2, 16], strides = [1, 1]} : vector<2x32xf32> to vector<2x16xf32>
    %42 = vector.extract_strided_slice %40 {offsets = [0, 16], sizes = [2, 16], strides = [1, 1]} : vector<2x32xf32> to vector<2x16xf32>
    %43 = vector.extract_strided_slice %25 {offsets = [0, 0], sizes = [2, 16], strides = [1, 1]} : vector<16x16xf32> to vector<2x16xf32>
    %44 = vector.extract_strided_slice %32 {offsets = [0, 32], sizes = [2, 16], strides = [1, 1]} : vector<2x48xf32> to vector<2x16xf32>
    %45 = arith.mulf %41, %44 : vector<2x16xf32>
    %46 = arith.addf %43, %45 : vector<2x16xf32>
    %47 = math.tanh %46 : vector<2x16xf32>
    %48 = arith.subf %30, %47 : vector<2x16xf32>
    %49 = arith.mulf %42, %48 : vector<2x16xf32>
    %50 = arith.addf %47, %49 : vector<2x16xf32>
    %cst_25 = arith.constant dense<0.000000e+00> : vector<2x48xf32>
    %51 = tpu.matmul %50, %26, %cst_25 {dimension_numbers = #tpu.dot_dimension_numbers<[1], [0], [0], [1], [0, 0, 1, 1], [], []>} : vector<2x16xf32>, vector<16x48xf32>, vector<2x48xf32> -> vector<2x48xf32>
    %52 = arith.addf %51, %29 : vector<2x48xf32>
    %53 = vector.extract_strided_slice %24 {offsets = [2, 0], sizes = [2, 32], strides = [1, 1]} : vector<16x32xf32> to vector<2x32xf32>
    %54 = vector.extract_strided_slice %52 {offsets = [0, 0], sizes = [2, 32], strides = [1, 1]} : vector<2x48xf32> to vector<2x32xf32>
    %55 = arith.addf %53, %54 : vector<2x32xf32>
    %56 = arith.negf %55 : vector<2x32xf32>
    %57 = math.exp %56 : vector<2x32xf32>
    %cst_26 = arith.constant 1.000000e+00 : f32
    %58 = vector.broadcast %cst_26 : f32 to vector<2x32xf32>
    %59 = arith.addf %58, %57 : vector<2x32xf32>
    %60 = arith.divf %58, %59 : vector<2x32xf32>
    %61 = vector.extract_strided_slice %60 {offsets = [0, 0], sizes = [2, 16], strides = [1, 1]} : vector<2x32xf32> to vector<2x16xf32>
    %62 = vector.extract_strided_slice %60 {offsets = [0, 16], sizes = [2, 16], strides = [1, 1]} : vector<2x32xf32> to vector<2x16xf32>
    %63 = vector.extract_strided_slice %25 {offsets = [2, 0], sizes = [2, 16], strides = [1, 1]} : vector<16x16xf32> to vector<2x16xf32>
    %64 = vector.extract_strided_slice %52 {offsets = [0, 32], sizes = [2, 16], strides = [1, 1]} : vector<2x48xf32> to vector<2x16xf32>
    %65 = arith.mulf %61, %64 : vector<2x16xf32>
    %66 = arith.addf %63, %65 : vector<2x16xf32>
    %67 = math.tanh %66 : vector<2x16xf32>
    %68 = arith.subf %50, %67 : vector<2x16xf32>
    %69 = arith.mulf %62, %68 : vector<2x16xf32>
    %70 = arith.addf %67, %69 : vector<2x16xf32>
    %cst_27 = arith.constant dense<0.000000e+00> : vector<2x48xf32>
    %71 = tpu.matmul %70, %26, %cst_27 {dimension_numbers = #tpu.dot_dimension_numbers<[1], [0], [0], [1], [0, 0, 1, 1], [], []>} : vector<2x16xf32>, vector<16x48xf32>, vector<2x48xf32> -> vector<2x48xf32>
    %72 = arith.addf %71, %29 : vector<2x48xf32>
    %73 = vector.extract_strided_slice %24 {offsets = [4, 0], sizes = [2, 32], strides = [1, 1]} : vector<16x32xf32> to vector<2x32xf32>
    %74 = vector.extract_strided_slice %72 {offsets = [0, 0], sizes = [2, 32], strides = [1, 1]} : vector<2x48xf32> to vector<2x32xf32>
    %75 = arith.addf %73, %74 : vector<2x32xf32>
    %76 = arith.negf %75 : vector<2x32xf32>
    %77 = math.exp %76 : vector<2x32xf32>
    %cst_28 = arith.constant 1.000000e+00 : f32
    %78 = vector.broadcast %cst_28 : f32 to vector<2x32xf32>
    %79 = arith.addf %78, %77 : vector<2x32xf32>
    %80 = arith.divf %78, %79 : vector<2x32xf32>
    %81 = vector.extract_strided_slice %80 {offsets = [0, 0], sizes = [2, 16], strides = [1, 1]} : vector<2x32xf32> to vector<2x16xf32>
    %82 = vector.extract_strided_slice %80 {offsets = [0, 16], sizes = [2, 16], strides = [1, 1]} : vector<2x32xf32> to vector<2x16xf32>
    %83 = vector.extract_strided_slice %25 {offsets = [4, 0], sizes = [2, 16], strides = [1, 1]} : vector<16x16xf32> to vector<2x16xf32>
    %84 = vector.extract_strided_slice %72 {offsets = [0, 32], sizes = [2, 16], strides = [1, 1]} : vector<2x48xf32> to vector<2x16xf32>
    %85 = arith.mulf %81, %84 : vector<2x16xf32>
    %86 = arith.addf %83, %85 : vector<2x16xf32>
    %87 = math.tanh %86 : vector<2x16xf32>
    %88 = arith.subf %70, %87 : vector<2x16xf32>
    %89 = arith.mulf %82, %88 : vector<2x16xf32>
    %90 = arith.addf %87, %89 : vector<2x16xf32>
    %cst_29 = arith.constant dense<0.000000e+00> : vector<2x48xf32>
    %91 = tpu.matmul %90, %26, %cst_29 {dimension_numbers = #tpu.dot_dimension_numbers<[1], [0], [0], [1], [0, 0, 1, 1], [], []>} : vector<2x16xf32>, vector<16x48xf32>, vector<2x48xf32> -> vector<2x48xf32>
    %92 = arith.addf %91, %29 : vector<2x48xf32>
    %93 = vector.extract_strided_slice %24 {offsets = [6, 0], sizes = [2, 32], strides = [1, 1]} : vector<16x32xf32> to vector<2x32xf32>
    %94 = vector.extract_strided_slice %92 {offsets = [0, 0], sizes = [2, 32], strides = [1, 1]} : vector<2x48xf32> to vector<2x32xf32>
    %95 = arith.addf %93, %94 : vector<2x32xf32>
    %96 = arith.negf %95 : vector<2x32xf32>
    %97 = math.exp %96 : vector<2x32xf32>
    %cst_30 = arith.constant 1.000000e+00 : f32
    %98 = vector.broadcast %cst_30 : f32 to vector<2x32xf32>
    %99 = arith.addf %98, %97 : vector<2x32xf32>
    %100 = arith.divf %98, %99 : vector<2x32xf32>
    %101 = vector.extract_strided_slice %100 {offsets = [0, 0], sizes = [2, 16], strides = [1, 1]} : vector<2x32xf32> to vector<2x16xf32>
    %102 = vector.extract_strided_slice %100 {offsets = [0, 16], sizes = [2, 16], strides = [1, 1]} : vector<2x32xf32> to vector<2x16xf32>
    %103 = vector.extract_strided_slice %25 {offsets = [6, 0], sizes = [2, 16], strides = [1, 1]} : vector<16x16xf32> to vector<2x16xf32>
    %104 = vector.extract_strided_slice %92 {offsets = [0, 32], sizes = [2, 16], strides = [1, 1]} : vector<2x48xf32> to vector<2x16xf32>
    %105 = arith.mulf %101, %104 : vector<2x16xf32>
    %106 = arith.addf %103, %105 : vector<2x16xf32>
    %107 = math.tanh %106 : vector<2x16xf32>
    %108 = arith.subf %90, %107 : vector<2x16xf32>
    %109 = arith.mulf %102, %108 : vector<2x16xf32>
    %110 = arith.addf %107, %109 : vector<2x16xf32>
    %cst_31 = arith.constant dense<0.000000e+00> : vector<2x48xf32>
    %111 = tpu.matmul %110, %26, %cst_31 {dimension_numbers = #tpu.dot_dimension_numbers<[1], [0], [0], [1], [0, 0, 1, 1], [], []>} : vector<2x16xf32>, vector<16x48xf32>, vector<2x48xf32> -> vector<2x48xf32>
    %112 = arith.addf %111, %29 : vector<2x48xf32>
    %113 = vector.extract_strided_slice %24 {offsets = [8, 0], sizes = [2, 32], strides = [1, 1]} : vector<16x32xf32> to vector<2x32xf32>
    %114 = vector.extract_strided_slice %112 {offsets = [0, 0], sizes = [2, 32], strides = [1, 1]} : vector<2x48xf32> to vector<2x32xf32>
    %115 = arith.addf %113, %114 : vector<2x32xf32>
    %116 = arith.negf %115 : vector<2x32xf32>
    %117 = math.exp %116 : vector<2x32xf32>
    %cst_32 = arith.constant 1.000000e+00 : f32
    %118 = vector.broadcast %cst_32 : f32 to vector<2x32xf32>
    %119 = arith.addf %118, %117 : vector<2x32xf32>
    %120 = arith.divf %118, %119 : vector<2x32xf32>
    %121 = vector.extract_strided_slice %120 {offsets = [0, 0], sizes = [2, 16], strides = [1, 1]} : vector<2x32xf32> to vector<2x16xf32>
    %122 = vector.extract_strided_slice %120 {offsets = [0, 16], sizes = [2, 16], strides = [1, 1]} : vector<2x32xf32> to vector<2x16xf32>
    %123 = vector.extract_strided_slice %25 {offsets = [8, 0], sizes = [2, 16], strides = [1, 1]} : vector<16x16xf32> to vector<2x16xf32>
    %124 = vector.extract_strided_slice %112 {offsets = [0, 32], sizes = [2, 16], strides = [1, 1]} : vector<2x48xf32> to vector<2x16xf32>
    %125 = arith.mulf %121, %124 : vector<2x16xf32>
    %126 = arith.addf %123, %125 : vector<2x16xf32>
    %127 = math.tanh %126 : vector<2x16xf32>
    %128 = arith.subf %110, %127 : vector<2x16xf32>
    %129 = arith.mulf %122, %128 : vector<2x16xf32>
    %130 = arith.addf %127, %129 : vector<2x16xf32>
    %cst_33 = arith.constant dense<0.000000e+00> : vector<2x48xf32>
    %131 = tpu.matmul %130, %26, %cst_33 {dimension_numbers = #tpu.dot_dimension_numbers<[1], [0], [0], [1], [0, 0, 1, 1], [], []>} : vector<2x16xf32>, vector<16x48xf32>, vector<2x48xf32> -> vector<2x48xf32>
    %132 = arith.addf %131, %29 : vector<2x48xf32>
    %133 = vector.extract_strided_slice %24 {offsets = [10, 0], sizes = [2, 32], strides = [1, 1]} : vector<16x32xf32> to vector<2x32xf32>
    %134 = vector.extract_strided_slice %132 {offsets = [0, 0], sizes = [2, 32], strides = [1, 1]} : vector<2x48xf32> to vector<2x32xf32>
    %135 = arith.addf %133, %134 : vector<2x32xf32>
    %136 = arith.negf %135 : vector<2x32xf32>
    %137 = math.exp %136 : vector<2x32xf32>
    %cst_34 = arith.constant 1.000000e+00 : f32
    %138 = vector.broadcast %cst_34 : f32 to vector<2x32xf32>
    %139 = arith.addf %138, %137 : vector<2x32xf32>
    %140 = arith.divf %138, %139 : vector<2x32xf32>
    %141 = vector.extract_strided_slice %140 {offsets = [0, 0], sizes = [2, 16], strides = [1, 1]} : vector<2x32xf32> to vector<2x16xf32>
    %142 = vector.extract_strided_slice %140 {offsets = [0, 16], sizes = [2, 16], strides = [1, 1]} : vector<2x32xf32> to vector<2x16xf32>
    %143 = vector.extract_strided_slice %25 {offsets = [10, 0], sizes = [2, 16], strides = [1, 1]} : vector<16x16xf32> to vector<2x16xf32>
    %144 = vector.extract_strided_slice %132 {offsets = [0, 32], sizes = [2, 16], strides = [1, 1]} : vector<2x48xf32> to vector<2x16xf32>
    %145 = arith.mulf %141, %144 : vector<2x16xf32>
    %146 = arith.addf %143, %145 : vector<2x16xf32>
    %147 = math.tanh %146 : vector<2x16xf32>
    %148 = arith.subf %130, %147 : vector<2x16xf32>
    %149 = arith.mulf %142, %148 : vector<2x16xf32>
    %150 = arith.addf %147, %149 : vector<2x16xf32>
    %cst_35 = arith.constant dense<0.000000e+00> : vector<2x48xf32>
    %151 = tpu.matmul %150, %26, %cst_35 {dimension_numbers = #tpu.dot_dimension_numbers<[1], [0], [0], [1], [0, 0, 1, 1], [], []>} : vector<2x16xf32>, vector<16x48xf32>, vector<2x48xf32> -> vector<2x48xf32>
    %152 = arith.addf %151, %29 : vector<2x48xf32>
    %153 = vector.extract_strided_slice %24 {offsets = [12, 0], sizes = [2, 32], strides = [1, 1]} : vector<16x32xf32> to vector<2x32xf32>
    %154 = vector.extract_strided_slice %152 {offsets = [0, 0], sizes = [2, 32], strides = [1, 1]} : vector<2x48xf32> to vector<2x32xf32>
    %155 = arith.addf %153, %154 : vector<2x32xf32>
    %156 = arith.negf %155 : vector<2x32xf32>
    %157 = math.exp %156 : vector<2x32xf32>
    %cst_36 = arith.constant 1.000000e+00 : f32
    %158 = vector.broadcast %cst_36 : f32 to vector<2x32xf32>
    %159 = arith.addf %158, %157 : vector<2x32xf32>
    %160 = arith.divf %158, %159 : vector<2x32xf32>
    %161 = vector.extract_strided_slice %160 {offsets = [0, 0], sizes = [2, 16], strides = [1, 1]} : vector<2x32xf32> to vector<2x16xf32>
    %162 = vector.extract_strided_slice %160 {offsets = [0, 16], sizes = [2, 16], strides = [1, 1]} : vector<2x32xf32> to vector<2x16xf32>
    %163 = vector.extract_strided_slice %25 {offsets = [12, 0], sizes = [2, 16], strides = [1, 1]} : vector<16x16xf32> to vector<2x16xf32>
    %164 = vector.extract_strided_slice %152 {offsets = [0, 32], sizes = [2, 16], strides = [1, 1]} : vector<2x48xf32> to vector<2x16xf32>
    %165 = arith.mulf %161, %164 : vector<2x16xf32>
    %166 = arith.addf %163, %165 : vector<2x16xf32>
    %167 = math.tanh %166 : vector<2x16xf32>
    %168 = arith.subf %150, %167 : vector<2x16xf32>
    %169 = arith.mulf %162, %168 : vector<2x16xf32>
    %170 = arith.addf %167, %169 : vector<2x16xf32>
    %cst_37 = arith.constant dense<0.000000e+00> : vector<2x48xf32>
    %171 = tpu.matmul %170, %26, %cst_37 {dimension_numbers = #tpu.dot_dimension_numbers<[1], [0], [0], [1], [0, 0, 1, 1], [], []>} : vector<2x16xf32>, vector<16x48xf32>, vector<2x48xf32> -> vector<2x48xf32>
    %172 = arith.addf %171, %29 : vector<2x48xf32>
    %173 = vector.extract_strided_slice %24 {offsets = [14, 0], sizes = [2, 32], strides = [1, 1]} : vector<16x32xf32> to vector<2x32xf32>
    %174 = vector.extract_strided_slice %172 {offsets = [0, 0], sizes = [2, 32], strides = [1, 1]} : vector<2x48xf32> to vector<2x32xf32>
    %175 = arith.addf %173, %174 : vector<2x32xf32>
    %176 = arith.negf %175 : vector<2x32xf32>
    %177 = math.exp %176 : vector<2x32xf32>
    %cst_38 = arith.constant 1.000000e+00 : f32
    %178 = vector.broadcast %cst_38 : f32 to vector<2x32xf32>
    %179 = arith.addf %178, %177 : vector<2x32xf32>
    %180 = arith.divf %178, %179 : vector<2x32xf32>
    %181 = vector.extract_strided_slice %180 {offsets = [0, 0], sizes = [2, 16], strides = [1, 1]} : vector<2x32xf32> to vector<2x16xf32>
    %182 = vector.extract_strided_slice %180 {offsets = [0, 16], sizes = [2, 16], strides = [1, 1]} : vector<2x32xf32> to vector<2x16xf32>
    %183 = vector.extract_strided_slice %25 {offsets = [14, 0], sizes = [2, 16], strides = [1, 1]} : vector<16x16xf32> to vector<2x16xf32>
    %184 = vector.extract_strided_slice %172 {offsets = [0, 32], sizes = [2, 16], strides = [1, 1]} : vector<2x48xf32> to vector<2x16xf32>
    %185 = arith.mulf %181, %184 : vector<2x16xf32>
    %186 = arith.addf %183, %185 : vector<2x16xf32>
    %187 = math.tanh %186 : vector<2x16xf32>
    %188 = arith.subf %170, %187 : vector<2x16xf32>
    %189 = arith.mulf %182, %188 : vector<2x16xf32>
    %190 = arith.addf %187, %189 : vector<2x16xf32>
    %191 = tpu.concatenate %50, %70, %90, %110, %130, %150, %170, %190 in 0 : vector<2x16xf32>, vector<2x16xf32>, vector<2x16xf32>, vector<2x16xf32>, vector<2x16xf32>, vector<2x16xf32>, vector<2x16xf32>, vector<2x16xf32> -> vector<16x16xf32>
    %c0_39 = arith.constant 0 : index
    %c0_40 = arith.constant 0 : index
    %192 = vector.load %arg9[%c0_39, %c0_40] : memref<16x128xf32, #tpu.memory_space<vmem>>, vector<16x128xf32>
    %cst_41 = arith.constant dense<0.000000e+00> : vector<16x128xf32>
    %193 = tpu.matmul %191, %192, %cst_41 {dimension_numbers = #tpu.dot_dimension_numbers<[1], [0], [0], [1], [0, 0, 1, 1], [], []>} : vector<16x16xf32>, vector<16x128xf32>, vector<16x128xf32> -> vector<16x128xf32>
    %c0_42 = arith.constant 0 : index
    %c0_43 = arith.constant 0 : index
    %194 = vector.load %arg10[%c0_42, %c0_43] : memref<1x128xf32, #tpu.memory_space<vmem>>, vector<1x128xf32>
    %195 = vector.broadcast %194 : vector<1x128xf32> to vector<16x128xf32>
    %196 = arith.addf %193, %195 : vector<16x128xf32>
    %c0_44 = arith.constant 0 : index
    %c0_45 = arith.constant 0 : index
    %197 = vector.load %arg11[%c0_44, %c0_45] : memref<16x128xf32, #tpu.memory_space<vmem>>, vector<16x128xf32>
    tpu.vector_store %arg11[%c0_44, %c0_45], %196 {strides = array<i32>} : memref<16x128xf32, #tpu.memory_space<vmem>>, vector<16x128xf32>,
    return
  }
}

</mosaic_0001>

<llo_original>
// kernel: tpu_custom_call.1
$region0: #{tpu_custom_call.1}
  #allocation0 [shape = 'u32[]', space=smem, size = 0x4, offset = 0x4, fixed_abs, tag = 'smem constant byte address 0x4 - core index']
  #allocation1 [shape = 'u32[144,128]{1,0:T(1,128)}', space=vmem, size = 0x12000, scoped, tag = 'internal scratch']
  %s0 = inlined_call_operand.vmem [shape: f32[16,4], index: 0, kind: input, shape index: {}]
  %s1 = inlined_call_operand.hbm [shape: f32[4,8], index: 1, kind: input, shape index: {}]
  %s2 = inlined_call_operand.vmem [shape: f32[1,8], index: 2, kind: input, shape index: {}]
  %s3 = inlined_call_operand.hbm [shape: f32[8,8], index: 3, kind: input, shape index: {}]
  %s4 = inlined_call_operand.vmem [shape: f32[1,8], index: 4, kind: input, shape index: {}]
  %s5 = inlined_call_operand.hbm [shape: f32[8,48], index: 5, kind: input, shape index: {}]
  %s6 = inlined_call_operand.vmem [shape: f32[1,48], index: 6, kind: input, shape index: {}]
  %s7 = inlined_call_operand.vmem [shape: f32[16,48], index: 7, kind: input, shape index: {}]
  %s8 = inlined_call_operand.vmem [shape: f32[1,48], index: 8, kind: input, shape index: {}]
  %s9 = inlined_call_operand.vmem [shape: f32[16,128], index: 9, kind: input, shape index: {}]
  %s10 = inlined_call_operand.vmem [shape: f32[1,128], index: 10, kind: input, shape index: {}]
  %s11 = inlined_call_operand.hbm [shape: f32[16,128], index: 11, kind: output, shape index: {}]
  %s12 = sld [smem:[#allocation0]]
  $region66: #{tpu_custom_call.1} parent=0
    _
  %s14 = ssub.s32 1, %s12
  %s15 = scalar_select 0, %s14, %s12
  $region1: #{tpu_custom_call.1} parent=0
    #allocation2 [shape = 'u8[2048]{0}', space=vmem, size = 0x800, scoped, tag = 'input window, operand 1, single buffered']
    #allocation3 [shape = 's32[1]{0}', space=sflag, size = 0x4, scoped, tag = 'scoped memory for tpu_custom_call.1']
    #allocation4 [shape = 's32[1]{0}', space=sflag, size = 0x4, scoped, tag = 'scoped memory for tpu_custom_call.1']
    #allocation5 [shape = 'u8[4096]{0}', space=vmem, size = 0x1000, scoped, tag = 'input window, operand 3, single buffered']
    #allocation6 [shape = 's32[1]{0}', space=sflag, size = 0x4, scoped, tag = 'scoped memory for tpu_custom_call.1']
    #allocation7 [shape = 'u8[4096]{0}', space=vmem, size = 0x1000, scoped, tag = 'input window, operand 5, single buffered']
    #allocation8 [shape = 'u8[8192]{0}', space=vmem, size = 0x2000, scoped, tag = 'output window, operand 0, single buffered']
    %16 = vsyncpa [#allocation3], 0
    %17 = vsyncpa [#allocation6], 0
    %18 = vsyncpa [#allocation4], 0
    // Predicated region
    $region2: #{tpu_custom_call.1} parent=1 // pred_check
      _
    $region3: #{tpu_custom_call.1} parent=1 // pred_check_branch
      %20 = sbr.rel (0) target = $region5
    $region4: #{tpu_custom_call.1} parent=1 // pred_region
      _
    $region5: #{tpu_custom_call.1} parent=1 // pred_fallthru
      _
    // Predicated region
    $region6: #{tpu_custom_call.1} parent=1 // pred_check
      _
    $region7: #{tpu_custom_call.1} parent=1 // pred_check_branch
      %22 = sbr.rel (0) target = $region9
    $region8: #{tpu_custom_call.1} parent=1 // pred_region
      %s24 = ssub.s32 64, 64
      %25 = vsyncadd [#allocation3], %s24
      %s27 = sshll.u32 [#allocation2], 4
      %s28 = int_to_ptr.vmem [resolvable:$true] %s27
      %30 = dma.hbm_to_vmem [thread:$0]  %s1, 64, %s28, [#allocation3]
    $region9: #{tpu_custom_call.1} parent=1 // pred_fallthru
      _
    // Predicated region
    $region10: #{tpu_custom_call.1} parent=1 // pred_check
      _
    $region11: #{tpu_custom_call.1} parent=1 // pred_check_branch
      %32 = sbr.rel (0) target = $region13
    $region12: #{tpu_custom_call.1} parent=1 // pred_region
      _
    $region13: #{tpu_custom_call.1} parent=1 // pred_fallthru
      _
    // Predicated region
    $region14: #{tpu_custom_call.1} parent=1 // pred_check
      _
    $region15: #{tpu_custom_call.1} parent=1 // pred_check_branch
      %34 = sbr.rel (0) target = $region17
    $region16: #{tpu_custom_call.1} parent=1 // pred_region
      %s36 = ssub.s32 128, 128
      %37 = vsyncadd [#allocation6], %s36
      %s39 = sshll.u32 [#allocation5], 4
      %s40 = int_to_ptr.vmem [resolvable:$true] %s39
      %42 = dma.hbm_to_vmem [thread:$0]  %s3, 128, %s40, [#allocation6]
    $region17: #{tpu_custom_call.1} parent=1 // pred_fallthru
      _
    // Predicated region
    $region18: #{tpu_custom_call.1} parent=1 // pred_check
      _
    $region19: #{tpu_custom_call.1} parent=1 // pred_check_branch
      %44 = sbr.rel (0) target = $region21
    $region20: #{tpu_custom_call.1} parent=1 // pred_region
      _
    $region21: #{tpu_custom_call.1} parent=1 // pred_fallthru
      _
    // Predicated region
    $region22: #{tpu_custom_call.1} parent=1 // pred_check
      _
    $region23: #{tpu_custom_call.1} parent=1 // pred_check_branch
      %46 = sbr.rel (0) target = $region25
    $region24: #{tpu_custom_call.1} parent=1 // pred_region
      %s48 = ssub.s32 128, 128
      %49 = vsyncadd [#allocation6], %s48
      %s51 = sshll.u32 [#allocation7], 4
      %s52 = int_to_ptr.vmem [resolvable:$true] %s51
      %54 = dma.hbm_to_vmem [thread:$0]  %s5, 128, %s52, [#allocation6]
    $region25: #{tpu_custom_call.1} parent=1 // pred_fallthru
      _
    // Predicated region
    $region26: #{tpu_custom_call.1} parent=1 // pred_check
      _
    $region27: #{tpu_custom_call.1} parent=1 // pred_check_branch
      %56 = sbr.rel (0) target = $region29
    $region28: #{tpu_custom_call.1} parent=1 // pred_region
      _
    $region29: #{tpu_custom_call.1} parent=1 // pred_fallthru
      _
    // Predicated region
    $region30: #{tpu_custom_call.1} parent=1 // pred_check
      _
    $region31: #{tpu_custom_call.1} parent=1 // pred_check_branch
      %58 = sbr.rel (0) target = $region33
    $region32: #{tpu_custom_call.1} parent=1 // pred_region
      _
    $region33: #{tpu_custom_call.1} parent=1 // pred_fallthru
      _
    // Predicated region
    $region34: #{tpu_custom_call.1} parent=1 // pred_check
      _
    $region35: #{tpu_custom_call.1} parent=1 // pred_check_branch
      %60 = sbr.rel (0) target = $region37
    $region36: #{tpu_custom_call.1} parent=1 // pred_region
      _
    $region37: #{tpu_custom_call.1} parent=1 // pred_fallthru
      _
    // Predicated region
    $region38: #{tpu_custom_call.1} parent=1 // pred_check
      _
    $region39: #{tpu_custom_call.1} parent=1 // pred_check_branch
      %62 = sbr.rel (0) target = $region41
    $region40: #{tpu_custom_call.1} parent=1 // pred_region
      _
    $region41: #{tpu_custom_call.1} parent=1 // pred_fallthru
      _
    // Predicated region
    $region42: #{tpu_custom_call.1} parent=1 // pred_check
      _
    $region43: #{tpu_custom_call.1} parent=1 // pred_check_branch
      %64 = sbr.rel (0) target = $region45
    $region44: #{tpu_custom_call.1} parent=1 // pred_region
      _
    $region45: #{tpu_custom_call.1} parent=1 // pred_fallthru
      _
    // Predicated region
    $region46: #{tpu_custom_call.1} parent=1 // pred_check
      _
    $region47: #{tpu_custom_call.1} parent=1 // pred_check_branch
      %66 = sbr.rel (0) target = $region49
    $region48: #{tpu_custom_call.1} parent=1 // pred_region
      %67 = dma.done [#allocation3], 64
    $region49: #{tpu_custom_call.1} parent=1 // pred_fallthru
      _
    // Predicated region
    $region50: #{tpu_custom_call.1} parent=1 // pred_check
      _
    $region51: #{tpu_custom_call.1} parent=1 // pred_check_branch
      %69 = sbr.rel (0) target = $region53
    $region52: #{tpu_custom_call.1} parent=1 // pred_region
      %70 = dma.done [#allocation6], 128
    $region53: #{tpu_custom_call.1} parent=1 // pred_fallthru
      _
    // Predicated region
    $region54: #{tpu_custom_call.1} parent=1 // pred_check
      _
    $region55: #{tpu_custom_call.1} parent=1 // pred_check_branch
      %72 = sbr.rel (0) target = $region57
    $region56: #{tpu_custom_call.1} parent=1 // pred_region
      %73 = dma.done [#allocation6], 128
    $region57: #{tpu_custom_call.1} parent=1 // pred_fallthru
      _
    %v74 = vld [vmem:[%s0] sm:$0xff]
    %v75 = vld [vmem:[%s0 + $0x8] sm:$0xff]
    %v76 = vld [vmem:[#allocation2] sm:$0xf]
    %v77 = vld [vmem:[%s2] sm:$0x1]
    %v79 = vlaneseq
    %v80 = vshrl.u32 %v79, 7
    %v81 = vsub.s32 0, %v80
    %v82 = vrot.slane %v77, %v81
    %vm84 = vcmask 31744
    %v86 = vsel %vm84, %v74, 0
    %v89 = vsel %vm84, %v75, 0
    %vm91 = vcmask 1043456
    %v93 = vsel %vm91, %v76, 0
    %95 = vmatprep.subr.mxu0 0.0
    %96 = vmatpush1.msra.mxu0 %v93
    %97 = vmatprep.subr.mxu0 0.0
    %98 = vmatpush1.msra.mxu0 0.0
    %99 = vmatprep.subr.mxu0 0.0
    %100 = vmatpush1.msra.mxu0 0.0
    %101 = vmatprep.subr.mxu0 0.0
    %102 = vmatpush1.msra.mxu0 0.0
    %103 = vmatprep.subr.mxu0 0.0
    %104 = vmatpush1.msra.mxu0 0.0
    %105 = vmatprep.subr.mxu0 0.0
    %106 = vmatpush1.msra.mxu0 0.0
    %107 = vmatprep.subr.mxu0 0.0
    %108 = vmatpush1.msra.mxu0 0.0
    %109 = vmatprep.subr.mxu0 0.0
    %110 = vmatpush1.msra.mxu0 0.0
    %111 = vmatprep.subr.mxu0 0.0
    %112 = vmatpush1.msra.mxu0 0.0
    %113 = vmatprep.subr.mxu0 0.0
    %114 = vmatpush1.msra.mxu0 0.0
    %115 = vmatprep.subr.mxu0 0.0
    %116 = vmatpush1.msra.mxu0 0.0
    %117 = vmatprep.subr.mxu0 0.0
    %118 = vmatpush1.msra.mxu0 0.0
    %119 = vmatprep.subr.mxu0 0.0
    %120 = vmatpush1.msra.mxu0 0.0
    %121 = vmatprep.subr.mxu0 0.0
    %122 = vmatpush1.msra.mxu0 0.0
    %123 = vmatprep.subr.mxu0 0.0
    %124 = vmatpush1.msra.mxu0 0.0
    %125 = vmatprep.subr.mxu0 0.0
    %126 = vmatpush1.msra.mxu0 0.0
    %127 = vmatprep.subr.mxu0 0.0
    %128 = vmatpush1.msra.mxu0 0.0
    %129 = vmatprep.subr.mxu0 0.0
    %130 = vmatpush1.msra.mxu0 0.0
    %131 = vmatprep.subr.mxu0 0.0
    %132 = vmatpush1.msra.mxu0 0.0
    %133 = vmatprep.subr.mxu0 0.0
    %134 = vmatpush1.msra.mxu0 0.0
    %135 = vmatprep.subr.mxu0 0.0
    %136 = vmatpush1.msra.mxu0 0.0
    %137 = vmatprep.subr.mxu0 0.0
    %138 = vmatpush1.msra.mxu0 0.0
    %139 = vmatprep.subr.mxu0 0.0
    %140 = vmatpush1.msra.mxu0 0.0
    %141 = vmatprep.subr.mxu0 0.0
    %142 = vmatpush1.msra.mxu0 0.0
    %143 = vmatprep.subr.mxu0 0.0
    %144 = vmatpush1.msra.mxu0 0.0
    %145 = vmatprep.subr.mxu0 0.0
    %146 = vmatpush1.msra.mxu0 0.0
    %147 = vmatprep.subr.mxu0 0.0
    %148 = vmatpush1.msra.mxu0 0.0
    %149 = vmatprep.subr.mxu0 0.0
    %150 = vmatpush1.msra.mxu0 0.0
    %151 = vmatprep.subr.mxu0 0.0
    %152 = vmatpush1.msra.mxu0 0.0
    %153 = vmatprep.subr.mxu0 0.0
    %154 = vmatpush1.msra.mxu0 0.0
    %155 = vmatprep.subr.mxu0 0.0
    %156 = vmatpush1.msra.mxu0 0.0
    %157 = vmatprep.subr.mxu0 0.0
    %158 = vmatpush1.msra.mxu0 0.0
    %159 = vmatprep.mubr.f32.mxu0 0.0
    %160 = vmatmul.mubr.f32.gmra.mrb[0].mxu0 %v86
    %v161 = vpop.f32.mrb[0].mxu0
    %v162 = vadd.f32 %v82, %v161
    %v163 = vpop.f32.mrb[0].mxu0
    %164 = vmatprep.mubr.f32.mxu0 0.0
    %165 = vmatmul.mubr.f32.gmra.mrb[0].mxu0 %v89
    %v166 = vpop.f32.mrb[0].mxu0
    %v167 = vadd.f32 %v82, %v166
    %v168 = vpop.f32.mrb[0].mxu0
    %169 = vdwg.mxu0
    %v170 = vld [vmem:[#allocation5] sm:$0xff]
    %v171 = vld [vmem:[%s4] sm:$0x1]
    %v173 = vlaneseq
    %v174 = vshrl.u32 %v173, 7
    %v175 = vsub.s32 0, %v174
    %v176 = vrot.slane %v171, %v175
    %vm178 = vcmask 64512
    %v180 = vsel %vm178, %v162, 0
    %v183 = vsel %vm178, %v167, 0
    %185 = vmatprep.subr.mxu0 0.0
    %186 = vmatpush1.msra.mxu0 %v170
    %187 = vmatprep.subr.mxu0 0.0
    %188 = vmatpush1.msra.mxu0 0.0
    %189 = vmatprep.subr.mxu0 0.0
    %190 = vmatpush1.msra.mxu0 0.0
    %191 = vmatprep.subr.mxu0 0.0
    %192 = vmatpush1.msra.mxu0 0.0
    %193 = vmatprep.subr.mxu0 0.0
    %194 = vmatpush1.msra.mxu0 0.0
    %195 = vmatprep.subr.mxu0 0.0
    %196 = vmatpush1.msra.mxu0 0.0
    %197 = vmatprep.subr.mxu0 0.0
    %198 = vmatpush1.msra.mxu0 0.0
    %199 = vmatprep.subr.mxu0 0.0
    %200 = vmatpush1.msra.mxu0 0.0
    %201 = vmatprep.subr.mxu0 0.0
    %202 = vmatpush1.msra.mxu0 0.0
    %203 = vmatprep.subr.mxu0 0.0
    %204 = vmatpush1.msra.mxu0 0.0
    %205 = vmatprep.subr.mxu0 0.0
    %206 = vmatpush1.msra.mxu0 0.0
    %207 = vmatprep.subr.mxu0 0.0
    %208 = vmatpush1.msra.mxu0 0.0
    %209 = vmatprep.subr.mxu0 0.0
    %210 = vmatpush1.msra.mxu0 0.0
    %211 = vmatprep.subr.mxu0 0.0
    %212 = vmatpush1.msra.mxu0 0.0
    %213 = vmatprep.subr.mxu0 0.0
    %214 = vmatpush1.msra.mxu0 0.0
    %215 = vmatprep.subr.mxu0 0.0
    %216 = vmatpush1.msra.mxu0 0.0
    %217 = vmatprep.subr.mxu0 0.0
    %218 = vmatpush1.msra.mxu0 0.0
    %219 = vmatprep.subr.mxu0 0.0
    %220 = vmatpush1.msra.mxu0 0.0
    %221 = vmatprep.subr.mxu0 0.0
    %222 = vmatpush1.msra.mxu0 0.0
    %223 = vmatprep.subr.mxu0 0.0
    %224 = vmatpush1.msra.mxu0 0.0
    %225 = vmatprep.subr.mxu0 0.0
    %226 = vmatpush1.msra.mxu0 0.0
    %227 = vmatprep.subr.mxu0 0.0
    %228 = vmatpush1.msra.mxu0 0.0
    %229 = vmatprep.subr.mxu0 0.0
    %230 = vmatpush1.msra.mxu0 0.0
    %231 = vmatprep.subr.mxu0 0.0
    %232 = vmatpush1.msra.mxu0 0.0
    %233 = vmatprep.subr.mxu0 0.0
    %234 = vmatpush1.msra.mxu0 0.0
    %235 = vmatprep.subr.mxu0 0.0
    %236 = vmatpush1.msra.mxu0 0.0
    %237 = vmatprep.subr.mxu0 0.0
    %238 = vmatpush1.msra.mxu0 0.0
    %239 = vmatprep.subr.mxu0 0.0
    %240 = vmatpush1.msra.mxu0 0.0
    %241 = vmatprep.subr.mxu0 0.0
    %242 = vmatpush1.msra.mxu0 0.0
    %243 = vmatprep.subr.mxu0 0.0
    %244 = vmatpush1.msra.mxu0 0.0
    %245 = vmatprep.subr.mxu0 0.0
    %246 = vmatpush1.msra.mxu0 0.0
    %247 = vmatprep.subr.mxu0 0.0
    %248 = vmatpush1.msra.mxu0 0.0
    %249 = vmatprep.mubr.f32.mxu0 0.0
    %250 = vmatmul.mubr.f32.gmra.mrb[0].mxu0 %v180
    %v251 = vpop.f32.mrb[0].mxu0
    %v252 = vadd.f32 %v176, %v251
    %v253 = vpop.f32.mrb[0].mxu0
    %254 = vmatprep.mubr.f32.mxu0 0.0
    %255 = vmatmul.mubr.f32.gmra.mrb[0].mxu0 %v183
    %v256 = vpop.f32.mrb[0].mxu0
    %v257 = vadd.f32 %v176, %v256
    %v258 = vpop.f32.mrb[0].mxu0
    %259 = vdwg.mxu0
    %vm260 = vcmp.gt.f32.partialorder %v252, 0.0
    %vm261 = vcmp.gt.f32.partialorder %v257, 0.0
    %v262 = vmin.f32 %v252, 0.0
    %v263 = vmin.f32 %v257, 0.0
    %v264 = vmul.f32 %v262, 1.442695
    %v265 = vpow.pop %v264
    %v266 = vmul.f32 %v263, 1.442695
    %v267 = vpow.pop %v266
    %v268 = vsub.f32 %v265, 1.0
    %v269 = vsub.f32 %v267, 1.0
    %v270 = vsel %vm260, %v252, %v268
    %v271 = vsel %vm261, %v257, %v269
    %v272 = vld [vmem:[#allocation7] sm:$0xff]
    %v273 = vld [vmem:[%s6] sm:$0x1]
    %v275 = vlaneseq
    %v276 = vshrl.u32 %v275, 7
    %v277 = vsub.s32 0, %v276
    %v278 = vrot.slane %v273, %v277
    %v281 = vsel %vm178, %v270, 0
    %v284 = vsel %vm178, %v271, 0
    %286 = vmatprep.subr.mxu0 0.0
    %287 = vmatpush1.msra.mxu0 %v272
    %288 = vmatprep.subr.mxu0 0.0
    %289 = vmatpush1.msra.mxu0 0.0
    %290 = vmatprep.subr.mxu0 0.0
    %291 = vmatpush1.msra.mxu0 0.0
    %292 = vmatprep.subr.mxu0 0.0
    %293 = vmatpush1.msra.mxu0 0.0
    %294 = vmatprep.subr.mxu0 0.0
    %295 = vmatpush1.msra.mxu0 0.0
    %296 = vmatprep.subr.mxu0 0.0
    %297 = vmatpush1.msra.mxu0 0.0
    %298 = vmatprep.subr.mxu0 0.0
    %299 = vmatpush1.msra.mxu0 0.0
    %300 = vmatprep.subr.mxu0 0.0
    %301 = vmatpush1.msra.mxu0 0.0
    %302 = vmatprep.subr.mxu0 0.0
    %303 = vmatpush1.msra.mxu0 0.0
    %304 = vmatprep.subr.mxu0 0.0
    %305 = vmatpush1.msra.mxu0 0.0
    %306 = vmatprep.subr.mxu0 0.0
    %307 = vmatpush1.msra.mxu0 0.0
    %308 = vmatprep.subr.mxu0 0.0
    %309 = vmatpush1.msra.mxu0 0.0
    %310 = vmatprep.subr.mxu0 0.0
    %311 = vmatpush1.msra.mxu0 0.0
    %312 = vmatprep.subr.mxu0 0.0
    %313 = vmatpush1.msra.mxu0 0.0
    %314 = vmatprep.subr.mxu0 0.0
    %315 = vmatpush1.msra.mxu0 0.0
    %316 = vmatprep.subr.mxu0 0.0
    %317 = vmatpush1.msra.mxu0 0.0
    %318 = vmatprep.subr.mxu0 0.0
    %319 = vmatpush1.msra.mxu0 0.0
    %320 = vmatprep.subr.mxu0 0.0
    %321 = vmatpush1.msra.mxu0 0.0
    %322 = vmatprep.subr.mxu0 0.0
    %323 = vmatpush1.msra.mxu0 0.0
    %324 = vmatprep.subr.mxu0 0.0
    %325 = vmatpush1.msra.mxu0 0.0
    %326 = vmatprep.subr.mxu0 0.0
    %327 = vmatpush1.msra.mxu0 0.0
    %328 = vmatprep.subr.mxu0 0.0
    %329 = vmatpush1.msra.mxu0 0.0
    %330 = vmatprep.subr.mxu0 0.0
    %331 = vmatpush1.msra.mxu0 0.0
    %332 = vmatprep.subr.mxu0 0.0
    %333 = vmatpush1.msra.mxu0 0.0
    %334 = vmatprep.subr.mxu0 0.0
    %335 = vmatpush1.msra.mxu0 0.0
    %336 = vmatprep.subr.mxu0 0.0
    %337 = vmatpush1.msra.mxu0 0.0
    %338 = vmatprep.subr.mxu0 0.0
    %339 = vmatpush1.msra.mxu0 0.0
    %340 = vmatprep.subr.mxu0 0.0
    %341 = vmatpush1.msra.mxu0 0.0
    %342 = vmatprep.subr.mxu0 0.0
    %343 = vmatpush1.msra.mxu0 0.0
    %344 = vmatprep.subr.mxu0 0.0
    %345 = vmatpush1.msra.mxu0 0.0
    %346 = vmatprep.subr.mxu0 0.0
    %347 = vmatpush1.msra.mxu0 0.0
    %348 = vmatprep.subr.mxu0 0.0
    %349 = vmatpush1.msra.mxu0 0.0
    %350 = vmatprep.mubr.f32.mxu0 0.0
    %351 = vmatmul.mubr.f32.gmra.mrb[0].mxu0 %v281
    %v352 = vpop.f32.mrb[0].mxu0
    %v353 = vadd.f32 %v278, %v352
    %v354 = vpop.f32.mrb[0].mxu0
    %355 = vmatprep.mubr.f32.mxu0 0.0
    %356 = vmatmul.mubr.f32.gmra.mrb[0].mxu0 %v284
    %v357 = vpop.f32.mrb[0].mxu0
    %v358 = vadd.f32 %v278, %v357
    %v359 = vpop.f32.mrb[0].mxu0
    %360 = vdwg.mxu0
    %v361 = vld [vmem:[%s7] sm:$0xff]
    %v362 = vld [vmem:[%s7 + $0x8] sm:$0xff]
    %v363 = vld [vmem:[%s8] sm:$0x1]
    %v365 = vlaneseq
    %v366 = vshrl.u32 %v365, 7
    %v367 = vsub.s32 0, %v366
    %v368 = vrot.slane %v363, %v367
    %vm370 = vcmask 130048
    %v372 = vsel %vm370, 0.0, 0
    %374 = vmatprep.subr.mxu0 0.0
    %375 = vmatpush1.msra.mxu0 %v361
    %376 = vmatprep.subr.mxu0 0.0
    %377 = vmatpush1.msra.mxu0 %v362
    %378 = vmatprep.subr.mxu0 0.0
    %379 = vmatpush1.msra.mxu0 0.0
    %380 = vmatprep.subr.mxu0 0.0
    %381 = vmatpush1.msra.mxu0 0.0
    %382 = vmatprep.subr.mxu0 0.0
    %383 = vmatpush1.msra.mxu0 0.0
    %384 = vmatprep.subr.mxu0 0.0
    %385 = vmatpush1.msra.mxu0 0.0
    %386 = vmatprep.subr.mxu0 0.0
    %387 = vmatpush1.msra.mxu0 0.0
    %388 = vmatprep.subr.mxu0 0.0
    %389 = vmatpush1.msra.mxu0 0.0
    %390 = vmatprep.subr.mxu0 0.0
    %391 = vmatpush1.msra.mxu0 0.0
    %392 = vmatprep.subr.mxu0 0.0
    %393 = vmatpush1.msra.mxu0 0.0
    %394 = vmatprep.subr.mxu0 0.0
    %395 = vmatpush1.msra.mxu0 0.0
    %396 = vmatprep.subr.mxu0 0.0
    %397 = vmatpush1.msra.mxu0 0.0
    %398 = vmatprep.subr.mxu0 0.0
    %399 = vmatpush1.msra.mxu0 0.0
    %400 = vmatprep.subr.mxu0 0.0
    %401 = vmatpush1.msra.mxu0 0.0
    %402 = vmatprep.subr.mxu0 0.0
    %403 = vmatpush1.msra.mxu0 0.0
    %404 = vmatprep.subr.mxu0 0.0
    %405 = vmatpush1.msra.mxu0 0.0
    %406 = vmatprep.subr.mxu0 0.0
    %407 = vmatpush1.msra.mxu0 0.0
    %408 = vmatprep.subr.mxu0 0.0
    %409 = vmatpush1.msra.mxu0 0.0
    %410 = vmatprep.subr.mxu0 0.0
    %411 = vmatpush1.msra.mxu0 0.0
    %412 = vmatprep.subr.mxu0 0.0
    %413 = vmatpush1.msra.mxu0 0.0
    %414 = vmatprep.subr.mxu0 0.0
    %415 = vmatpush1.msra.mxu0 0.0
    %416 = vmatprep.subr.mxu0 0.0
    %417 = vmatpush1.msra.mxu0 0.0
    %418 = vmatprep.subr.mxu0 0.0
    %419 = vmatpush1.msra.mxu0 0.0
    %420 = vmatprep.subr.mxu0 0.0
    %421 = vmatpush1.msra.mxu0 0.0
    %422 = vmatprep.subr.mxu0 0.0
    %423 = vmatpush1.msra.mxu0 0.0
    %424 = vmatprep.subr.mxu0 0.0
    %425 = vmatpush1.msra.mxu0 0.0
    %426 = vmatprep.subr.mxu0 0.0
    %427 = vmatpush1.msra.mxu0 0.0
    %428 = vmatprep.subr.mxu0 0.0
    %429 = vmatpush1.msra.mxu0 0.0
    %430 = vmatprep.subr.mxu0 0.0
    %431 = vmatpush1.msra.mxu0 0.0
    %432 = vmatprep.subr.mxu0 0.0
    %433 = vmatpush1.msra.mxu0 0.0
    %434 = vmatprep.subr.mxu0 0.0
    %435 = vmatpush1.msra.mxu0 0.0
    %436 = vmatprep.subr.mxu0 0.0
    %437 = vmatpush1.msra.mxu0 0.0
    %438 = vmatprep.mubr.f32.mxu0 0.0
    %439 = vmatmul.mubr.f32.gmra.mrb[0].mxu0 %v372
    %v440 = vpop.f32.mrb[0].mxu0
    %v441 = vadd.f32 %v368, %v440
    %v442 = vpop.f32.mrb[0].mxu0
    %443 = vdwg.mxu0
    %v444 = vadd.f32 %v353, %v441
    %v445 = vxor.u32 %v444, 2147483648
    %v446 = vmul.f32 %v445, 1.442695
    %v447 = vpow.pop %v446
    %v448 = vadd.f32 %v447, 1.0
    %v449 = vrcp.pop %v448
    %v450 = vmul.f32 1.0, %v449
    %452 = vrot.lane.b32.xlu0 %v441, 96
    %v453 = vpop.permute.xlu0 %452
    %v455 = vmul.f32 %v450, %v453
    %457 = vrot.lane.b32.xlu0 %v455, 32
    %v458 = vpop.permute.xlu0 %457
    %v460 = vadd.f32 %v353, %v458
    %v461 = vtanh.pop %v460
    %v462 = vsub.f32 0.0, %v461
    %464 = vrot.lane.b32.xlu0 %v462, 112
    %v465 = vpop.permute.xlu0 %464
    %v467 = vmul.f32 %v450, %v465
    %469 = vrot.lane.b32.xlu0 %v467, 16
    %v470 = vpop.permute.xlu0 %469
    %v472 = vadd.f32 %v461, %v470
    %474 = vrot.lane.b32.xlu0 %v472, 96
    %v475 = vpop.permute.xlu0 %474
    %v476 = vsel %vm370, %v475, 0
    %478 = vmatprep.subr.mxu0 0.0
    %479 = vmatpush1.msra.mxu0 %v361
    %480 = vmatprep.subr.mxu0 0.0
    %481 = vmatpush1.msra.mxu0 %v362
    %482 = vmatprep.subr.mxu0 0.0
    %483 = vmatpush1.msra.mxu0 0.0
    %484 = vmatprep.subr.mxu0 0.0
    %485 = vmatpush1.msra.mxu0 0.0
    %486 = vmatprep.subr.mxu0 0.0
    %487 = vmatpush1.msra.mxu0 0.0
    %488 = vmatprep.subr.mxu0 0.0
    %489 = vmatpush1.msra.mxu0 0.0
    %490 = vmatprep.subr.mxu0 0.0
    %491 = vmatpush1.msra.mxu0 0.0
    %492 = vmatprep.subr.mxu0 0.0
    %493 = vmatpush1.msra.mxu0 0.0
    %494 = vmatprep.subr.mxu0 0.0
    %495 = vmatpush1.msra.mxu0 0.0
    %496 = vmatprep.subr.mxu0 0.0
    %497 = vmatpush1.msra.mxu0 0.0
    %498 = vmatprep.subr.mxu0 0.0
    %499 = vmatpush1.msra.mxu0 0.0
    %500 = vmatprep.subr.mxu0 0.0
    %501 = vmatpush1.msra.mxu0 0.0
    %502 = vmatprep.subr.mxu0 0.0
    %503 = vmatpush1.msra.mxu0 0.0
    %504 = vmatprep.subr.mxu0 0.0
    %505 = vmatpush1.msra.mxu0 0.0
    %506 = vmatprep.subr.mxu0 0.0
    %507 = vmatpush1.msra.mxu0 0.0
    %508 = vmatprep.subr.mxu0 0.0
    %509 = vmatpush1.msra.mxu0 0.0
    %510 = vmatprep.subr.mxu0 0.0
    %511 = vmatpush1.msra.mxu0 0.0
    %512 = vmatprep.subr.mxu0 0.0
    %513 = vmatpush1.msra.mxu0 0.0
    %514 = vmatprep.subr.mxu0 0.0
    %515 = vmatpush1.msra.mxu0 0.0
    %516 = vmatprep.subr.mxu0 0.0
    %517 = vmatpush1.msra.mxu0 0.0
    %518 = vmatprep.subr.mxu0 0.0
    %519 = vmatpush1.msra.mxu0 0.0
    %520 = vmatprep.subr.mxu0 0.0
    %521 = vmatpush1.msra.mxu0 0.0
    %522 = vmatprep.subr.mxu0 0.0
    %523 = vmatpush1.msra.mxu0 0.0
    %524 = vmatprep.subr.mxu0 0.0
    %525 = vmatpush1.msra.mxu0 0.0
    %526 = vmatprep.subr.mxu0 0.0
    %527 = vmatpush1.msra.mxu0 0.0
    %528 = vmatprep.subr.mxu0 0.0
    %529 = vmatpush1.msra.mxu0 0.0
    %530 = vmatprep.subr.mxu0 0.0
    %531 = vmatpush1.msra.mxu0 0.0
    %532 = vmatprep.subr.mxu0 0.0
    %533 = vmatpush1.msra.mxu0 0.0
    %534 = vmatprep.subr.mxu0 0.0
    %535 = vmatpush1.msra.mxu0 0.0
    %536 = vmatprep.subr.mxu0 0.0
    %537 = vmatpush1.msra.mxu0 0.0
    %538 = vmatprep.subr.mxu0 0.0
    %539 = vmatpush1.msra.mxu0 0.0
    %540 = vmatprep.subr.mxu0 0.0
    %541 = vmatpush1.msra.mxu0 0.0
    %542 = vmatprep.mubr.f32.mxu0 0.0
    %543 = vmatmul.mubr.f32.gmra.mrb[0].mxu0 %v476
    %v544 = vpop.f32.mrb[0].mxu0
    %v545 = vadd.f32 %v368, %v544
    %v546 = vpop.f32.mrb[0].mxu0
    %547 = vdwg.mxu0
    %v549 = vrot.slane %v545, 6
    %v551 = vadd.f32 %v353, %v549
    %v552 = vxor.u32 %v551, 2147483648
    %v553 = vmul.f32 %v552, 1.442695
    %v554 = vpow.pop %v553
    %v555 = vadd.f32 %v554, 1.0
    %v556 = vrcp.pop %v555
    %v557 = vmul.f32 1.0, %v556
    %558 = vrot.lane.b32.xlu0 %v549, 96
    %v559 = vpop.permute.xlu0 %558
    %v561 = vmul.f32 %v557, %v559
    %563 = vrot.lane.b32.xlu0 %v561, 32
    %v564 = vpop.permute.xlu0 %563
    %v566 = vadd.f32 %v353, %v564
    %v567 = vtanh.pop %v566
    %v569 = vrot.slane %v567, 2
    %v571 = vsub.f32 %v472, %v569
    %v573 = vrot.slane %v571, 6
    %574 = vrot.lane.b32.xlu0 %v573, 112
    %v575 = vpop.permute.xlu0 %574
    %v577 = vmul.f32 %v557, %v575
    %579 = vrot.lane.b32.xlu0 %v577, 16
    %v580 = vpop.permute.xlu0 %579
    %v582 = vadd.f32 %v567, %v580
    %v584 = vrot.slane %v582, 2
    %585 = vrot.lane.b32.xlu0 %v584, 96
    %v586 = vpop.permute.xlu0 %585
    %v587 = vsel %vm370, %v586, 0
    %589 = vmatprep.subr.mxu0 0.0
    %590 = vmatpush1.msra.mxu0 %v361
    %591 = vmatprep.subr.mxu0 0.0
    %592 = vmatpush1.msra.mxu0 %v362
    %593 = vmatprep.subr.mxu0 0.0
    %594 = vmatpush1.msra.mxu0 0.0
    %595 = vmatprep.subr.mxu0 0.0
    %596 = vmatpush1.msra.mxu0 0.0
    %597 = vmatprep.subr.mxu0 0.0
    %598 = vmatpush1.msra.mxu0 0.0
    %599 = vmatprep.subr.mxu0 0.0
    %600 = vmatpush1.msra.mxu0 0.0
    %601 = vmatprep.subr.mxu0 0.0
    %602 = vmatpush1.msra.mxu0 0.0
    %603 = vmatprep.subr.mxu0 0.0
    %604 = vmatpush1.msra.mxu0 0.0
    %605 = vmatprep.subr.mxu0 0.0
    %606 = vmatpush1.msra.mxu0 0.0
    %607 = vmatprep.subr.mxu0 0.0
    %608 = vmatpush1.msra.mxu0 0.0
    %609 = vmatprep.subr.mxu0 0.0
    %610 = vmatpush1.msra.mxu0 0.0
    %611 = vmatprep.subr.mxu0 0.0
    %612 = vmatpush1.msra.mxu0 0.0
    %613 = vmatprep.subr.mxu0 0.0
    %614 = vmatpush1.msra.mxu0 0.0
    %615 = vmatprep.subr.mxu0 0.0
    %616 = vmatpush1.msra.mxu0 0.0
    %617 = vmatprep.subr.mxu0 0.0
    %618 = vmatpush1.msra.mxu0 0.0
    %619 = vmatprep.subr.mxu0 0.0
    %620 = vmatpush1.msra.mxu0 0.0
    %621 = vmatprep.subr.mxu0 0.0
    %622 = vmatpush1.msra.mxu0 0.0
    %623 = vmatprep.subr.mxu0 0.0
    %624 = vmatpush1.msra.mxu0 0.0
    %625 = vmatprep.subr.mxu0 0.0
    %626 = vmatpush1.msra.mxu0 0.0
    %627 = vmatprep.subr.mxu0 0.0
    %628 = vmatpush1.msra.mxu0 0.0
    %629 = vmatprep.subr.mxu0 0.0
    %630 = vmatpush1.msra.mxu0 0.0
    %631 = vmatprep.subr.mxu0 0.0
    %632 = vmatpush1.msra.mxu0 0.0
    %633 = vmatprep.subr.mxu0 0.0
    %634 = vmatpush1.msra.mxu0 0.0
    %635 = vmatprep.subr.mxu0 0.0
    %636 = vmatpush1.msra.mxu0 0.0
    %637 = vmatprep.subr.mxu0 0.0
    %638 = vmatpush1.msra.mxu0 0.0
    %639 = vmatprep.subr.mxu0 0.0
    %640 = vmatpush1.msra.mxu0 0.0
    %641 = vmatprep.subr.mxu0 0.0
    %642 = vmatpush1.msra.mxu0 0.0
    %643 = vmatprep.subr.mxu0 0.0
    %644 = vmatpush1.msra.mxu0 0.0
    %645 = vmatprep.subr.mxu0 0.0
    %646 = vmatpush1.msra.mxu0 0.0
    %647 = vmatprep.subr.mxu0 0.0
    %648 = vmatpush1.msra.mxu0 0.0
    %649 = vmatprep.subr.mxu0 0.0
    %650 = vmatpush1.msra.mxu0 0.0
    %651 = vmatprep.subr.mxu0 0.0
    %652 = vmatpush1.msra.mxu0 0.0
    %653 = vmatprep.mubr.f32.mxu0 0.0
    %654 = vmatmul.mubr.f32.gmra.mrb[0].mxu0 %v587
    %v655 = vpop.f32.mrb[0].mxu0
    %v656 = vadd.f32 %v368, %v655
    %v657 = vpop.f32.mrb[0].mxu0
    %658 = vdwg.mxu0
    %v660 = vrot.slane %v656, 4
    %v662 = vadd.f32 %v353, %v660
    %v663 = vxor.u32 %v662, 2147483648
    %v664 = vmul.f32 %v663, 1.442695
    %v665 = vpow.pop %v664
    %v666 = vadd.f32 %v665, 1.0
    %v667 = vrcp.pop %v666
    %v668 = vmul.f32 1.0, %v667
    %669 = vrot.lane.b32.xlu0 %v660, 96
    %v670 = vpop.permute.xlu0 %669
    %v672 = vmul.f32 %v668, %v670
    %674 = vrot.lane.b32.xlu0 %v672, 32
    %v675 = vpop.permute.xlu0 %674
    %v677 = vadd.f32 %v353, %v675
    %v678 = vtanh.pop %v677
    %v680 = vrot.slane %v678, 2
    %v682 = vsub.f32 %v582, %v680
    %v684 = vrot.slane %v682, 6
    %685 = vrot.lane.b32.xlu0 %v684, 112
    %v686 = vpop.permute.xlu0 %685
    %v688 = vmul.f32 %v668, %v686
    %690 = vrot.lane.b32.xlu0 %v688, 16
    %v691 = vpop.permute.xlu0 %690
    %v693 = vadd.f32 %v678, %v691
    %v695 = vrot.slane %v693, 4
    %696 = vrot.lane.b32.xlu0 %v695, 96
    %v697 = vpop.permute.xlu0 %696
    %v698 = vsel %vm370, %v697, 0
    %700 = vmatprep.subr.mxu0 0.0
    %701 = vmatpush1.msra.mxu0 %v361
    %702 = vmatprep.subr.mxu0 0.0
    %703 = vmatpush1.msra.mxu0 %v362
    %704 = vmatprep.subr.mxu0 0.0
    %705 = vmatpush1.msra.mxu0 0.0
    %706 = vmatprep.subr.mxu0 0.0
    %707 = vmatpush1.msra.mxu0 0.0
    %708 = vmatprep.subr.mxu0 0.0
    %709 = vmatpush1.msra.mxu0 0.0
    %710 = vmatprep.subr.mxu0 0.0
    %711 = vmatpush1.msra.mxu0 0.0
    %712 = vmatprep.subr.mxu0 0.0
    %713 = vmatpush1.msra.mxu0 0.0
    %714 = vmatprep.subr.mxu0 0.0
    %715 = vmatpush1.msra.mxu0 0.0
    %716 = vmatprep.subr.mxu0 0.0
    %717 = vmatpush1.msra.mxu0 0.0
    %718 = vmatprep.subr.mxu0 0.0
    %719 = vmatpush1.msra.mxu0 0.0
    %720 = vmatprep.subr.mxu0 0.0
    %721 = vmatpush1.msra.mxu0 0.0
    %722 = vmatprep.subr.mxu0 0.0
    %723 = vmatpush1.msra.mxu0 0.0
    %724 = vmatprep.subr.mxu0 0.0
    %725 = vmatpush1.msra.mxu0 0.0
    %726 = vmatprep.subr.mxu0 0.0
    %727 = vmatpush1.msra.mxu0 0.0
    %728 = vmatprep.subr.mxu0 0.0
    %729 = vmatpush1.msra.mxu0 0.0
    %730 = vmatprep.subr.mxu0 0.0
    %731 = vmatpush1.msra.mxu0 0.0
    %732 = vmatprep.subr.mxu0 0.0
    %733 = vmatpush1.msra.mxu0 0.0
    %734 = vmatprep.subr.mxu0 0.0
    %735 = vmatpush1.msra.mxu0 0.0
    %736 = vmatprep.subr.mxu0 0.0
    %737 = vmatpush1.msra.mxu0 0.0
    %738 = vmatprep.subr.mxu0 0.0
    %739 = vmatpush1.msra.mxu0 0.0
    %740 = vmatprep.subr.mxu0 0.0
    %741 = vmatpush1.msra.mxu0 0.0
    %742 = vmatprep.subr.mxu0 0.0
    %743 = vmatpush1.msra.mxu0 0.0
    %744 = vmatprep.subr.mxu0 0.0
    %745 = vmatpush1.msra.mxu0 0.0
    %746 = vmatprep.subr.mxu0 0.0
    %747 = vmatpush1.msra.mxu0 0.0
    %748 = vmatprep.subr.mxu0 0.0
    %749 = vmatpush1.msra.mxu0 0.0
    %750 = vmatprep.subr.mxu0 0.0
    %751 = vmatpush1.msra.mxu0 0.0
    %752 = vmatprep.subr.mxu0 0.0
    %753 = vmatpush1.msra.mxu0 0.0
    %754 = vmatprep.subr.mxu0 0.0
    %755 = vmatpush1.msra.mxu0 0.0
    %756 = vmatprep.subr.mxu0 0.0
    %757 = vmatpush1.msra.mxu0 0.0
    %758 = vmatprep.subr.mxu0 0.0
    %759 = vmatpush1.msra.mxu0 0.0
    %760 = vmatprep.subr.mxu0 0.0
    %761 = vmatpush1.msra.mxu0 0.0
    %762 = vmatprep.subr.mxu0 0.0
    %763 = vmatpush1.msra.mxu0 0.0
    %764 = vmatprep.mubr.f32.mxu0 0.0
    %765 = vmatmul.mubr.f32.gmra.mrb[0].mxu0 %v698
    %v766 = vpop.f32.mrb[0].mxu0
    %v767 = vadd.f32 %v368, %v766
    %v768 = vpop.f32.mrb[0].mxu0
    %769 = vdwg.mxu0
    %v771 = vrot.slane %v767, 2
    %v773 = vadd.f32 %v353, %v771
    %v774 = vxor.u32 %v773, 2147483648
    %v775 = vmul.f32 %v774, 1.442695
    %v776 = vpow.pop %v775
    %v777 = vadd.f32 %v776, 1.0
    %v778 = vrcp.pop %v777
    %v779 = vmul.f32 1.0, %v778
    %780 = vrot.lane.b32.xlu0 %v771, 96
    %v781 = vpop.permute.xlu0 %780
    %v783 = vmul.f32 %v779, %v781
    %785 = vrot.lane.b32.xlu0 %v783, 32
    %v786 = vpop.permute.xlu0 %785
    %v788 = vadd.f32 %v353, %v786
    %v789 = vtanh.pop %v788
    %v791 = vrot.slane %v789, 2
    %v793 = vsub.f32 %v693, %v791
    %v795 = vrot.slane %v793, 6
    %796 = vrot.lane.b32.xlu0 %v795, 112
    %v797 = vpop.permute.xlu0 %796
    %v799 = vmul.f32 %v779, %v797
    %801 = vrot.lane.b32.xlu0 %v799, 16
    %v802 = vpop.permute.xlu0 %801
    %v804 = vadd.f32 %v789, %v802
    %v806 = vrot.slane %v804, 6
    %807 = vrot.lane.b32.xlu0 %v806, 96
    %v808 = vpop.permute.xlu0 %807
    %v809 = vsel %vm370, %v808, 0
    %811 = vmatprep.subr.mxu0 0.0
    %812 = vmatpush1.msra.mxu0 %v361
    %813 = vmatprep.subr.mxu0 0.0
    %814 = vmatpush1.msra.mxu0 %v362
    %815 = vmatprep.subr.mxu0 0.0
    %816 = vmatpush1.msra.mxu0 0.0
    %817 = vmatprep.subr.mxu0 0.0
    %818 = vmatpush1.msra.mxu0 0.0
    %819 = vmatprep.subr.mxu0 0.0
    %820 = vmatpush1.msra.mxu0 0.0
    %821 = vmatprep.subr.mxu0 0.0
    %822 = vmatpush1.msra.mxu0 0.0
    %823 = vmatprep.subr.mxu0 0.0
    %824 = vmatpush1.msra.mxu0 0.0
    %825 = vmatprep.subr.mxu0 0.0
    %826 = vmatpush1.msra.mxu0 0.0
    %827 = vmatprep.subr.mxu0 0.0
    %828 = vmatpush1.msra.mxu0 0.0
    %829 = vmatprep.subr.mxu0 0.0
    %830 = vmatpush1.msra.mxu0 0.0
    %831 = vmatprep.subr.mxu0 0.0
    %832 = vmatpush1.msra.mxu0 0.0
    %833 = vmatprep.subr.mxu0 0.0
    %834 = vmatpush1.msra.mxu0 0.0
    %835 = vmatprep.subr.mxu0 0.0
    %836 = vmatpush1.msra.mxu0 0.0
    %837 = vmatprep.subr.mxu0 0.0
    %838 = vmatpush1.msra.mxu0 0.0
    %839 = vmatprep.subr.mxu0 0.0
    %840 = vmatpush1.msra.mxu0 0.0
    %841 = vmatprep.subr.mxu0 0.0
    %842 = vmatpush1.msra.mxu0 0.0
    %843 = vmatprep.subr.mxu0 0.0
    %844 = vmatpush1.msra.mxu0 0.0
    %845 = vmatprep.subr.mxu0 0.0
    %846 = vmatpush1.msra.mxu0 0.0
    %847 = vmatprep.subr.mxu0 0.0
    %848 = vmatpush1.msra.mxu0 0.0
    %849 = vmatprep.subr.mxu0 0.0
    %850 = vmatpush1.msra.mxu0 0.0
    %851 = vmatprep.subr.mxu0 0.0
    %852 = vmatpush1.msra.mxu0 0.0
    %853 = vmatprep.subr.mxu0 0.0
    %854 = vmatpush1.msra.mxu0 0.0
    %855 = vmatprep.subr.mxu0 0.0
    %856 = vmatpush1.msra.mxu0 0.0
    %857 = vmatprep.subr.mxu0 0.0
    %858 = vmatpush1.msra.mxu0 0.0
    %859 = vmatprep.subr.mxu0 0.0
    %860 = vmatpush1.msra.mxu0 0.0
    %861 = vmatprep.subr.mxu0 0.0
    %862 = vmatpush1.msra.mxu0 0.0
    %863 = vmatprep.subr.mxu0 0.0
    %864 = vmatpush1.msra.mxu0 0.0
    %865 = vmatprep.subr.mxu0 0.0
    %866 = vmatpush1.msra.mxu0 0.0
    %867 = vmatprep.subr.mxu0 0.0
    %868 = vmatpush1.msra.mxu0 0.0
    %869 = vmatprep.subr.mxu0 0.0
    %870 = vmatpush1.msra.mxu0 0.0
    %871 = vmatprep.subr.mxu0 0.0
    %872 = vmatpush1.msra.mxu0 0.0
    %873 = vmatprep.subr.mxu0 0.0
    %874 = vmatpush1.msra.mxu0 0.0
    %875 = vmatprep.mubr.f32.mxu0 0.0
    %876 = vmatmul.mubr.f32.gmra.mrb[0].mxu0 %v809
    %v877 = vpop.f32.mrb[0].mxu0
    %v878 = vadd.f32 %v368, %v877
    %v879 = vpop.f32.mrb[0].mxu0
    %880 = vdwg.mxu0
    %v881 = vadd.f32 %v358, %v878
    %v882 = vxor.u32 %v881, 2147483648
    %v883 = vmul.f32 %v882, 1.442695
    %v884 = vpow.pop %v883
    %v885 = vadd.f32 %v884, 1.0
    %v886 = vrcp.pop %v885
    %v887 = vmul.f32 1.0, %v886
    %889 = vrot.lane.b32.xlu0 %v878, 96
    %v890 = vpop.permute.xlu0 %889
    %v892 = vmul.f32 %v887, %v890
    %894 = vrot.lane.b32.xlu0 %v892, 32
    %v895 = vpop.permute.xlu0 %894
    %v897 = vadd.f32 %v358, %v895
    %v898 = vtanh.pop %v897
    %v900 = vrot.slane %v898, 2
    %v902 = vsub.f32 %v804, %v900
    %v904 = vrot.slane %v902, 6
    %905 = vrot.lane.b32.xlu0 %v904, 112
    %v906 = vpop.permute.xlu0 %905
    %v908 = vmul.f32 %v887, %v906
    %910 = vrot.lane.b32.xlu0 %v908, 16
    %v911 = vpop.permute.xlu0 %910
    %v913 = vadd.f32 %v898, %v911
    %915 = vrot.lane.b32.xlu0 %v913, 96
    %v916 = vpop.permute.xlu0 %915
    %v917 = vsel %vm370, %v916, 0
    %919 = vmatprep.subr.mxu0 0.0
    %920 = vmatpush1.msra.mxu0 %v361
    %921 = vmatprep.subr.mxu0 0.0
    %922 = vmatpush1.msra.mxu0 %v362
    %923 = vmatprep.subr.mxu0 0.0
    %924 = vmatpush1.msra.mxu0 0.0
    %925 = vmatprep.subr.mxu0 0.0
    %926 = vmatpush1.msra.mxu0 0.0
    %927 = vmatprep.subr.mxu0 0.0
    %928 = vmatpush1.msra.mxu0 0.0
    %929 = vmatprep.subr.mxu0 0.0
    %930 = vmatpush1.msra.mxu0 0.0
    %931 = vmatprep.subr.mxu0 0.0
    %932 = vmatpush1.msra.mxu0 0.0
    %933 = vmatprep.subr.mxu0 0.0
    %934 = vmatpush1.msra.mxu0 0.0
    %935 = vmatprep.subr.mxu0 0.0
    %936 = vmatpush1.msra.mxu0 0.0
    %937 = vmatprep.subr.mxu0 0.0
    %938 = vmatpush1.msra.mxu0 0.0
    %939 = vmatprep.subr.mxu0 0.0
    %940 = vmatpush1.msra.mxu0 0.0
    %941 = vmatprep.subr.mxu0 0.0
    %942 = vmatpush1.msra.mxu0 0.0
    %943 = vmatprep.subr.mxu0 0.0
    %944 = vmatpush1.msra.mxu0 0.0
    %945 = vmatprep.subr.mxu0 0.0
    %946 = vmatpush1.msra.mxu0 0.0
    %947 = vmatprep.subr.mxu0 0.0
    %948 = vmatpush1.msra.mxu0 0.0
    %949 = vmatprep.subr.mxu0 0.0
    %950 = vmatpush1.msra.mxu0 0.0
    %951 = vmatprep.subr.mxu0 0.0
    %952 = vmatpush1.msra.mxu0 0.0
    %953 = vmatprep.subr.mxu0 0.0
    %954 = vmatpush1.msra.mxu0 0.0
    %955 = vmatprep.subr.mxu0 0.0
    %956 = vmatpush1.msra.mxu0 0.0
    %957 = vmatprep.subr.mxu0 0.0
    %958 = vmatpush1.msra.mxu0 0.0
    %959 = vmatprep.subr.mxu0 0.0
    %960 = vmatpush1.msra.mxu0 0.0
    %961 = vmatprep.subr.mxu0 0.0
    %962 = vmatpush1.msra.mxu0 0.0
    %963 = vmatprep.subr.mxu0 0.0
    %964 = vmatpush1.msra.mxu0 0.0
    %965 = vmatprep.subr.mxu0 0.0
    %966 = vmatpush1.msra.mxu0 0.0
    %967 = vmatprep.subr.mxu0 0.0
    %968 = vmatpush1.msra.mxu0 0.0
    %969 = vmatprep.subr.mxu0 0.0
    %970 = vmatpush1.msra.mxu0 0.0
    %971 = vmatprep.subr.mxu0 0.0
    %972 = vmatpush1.msra.mxu0 0.0
    %973 = vmatprep.subr.mxu0 0.0
    %974 = vmatpush1.msra.mxu0 0.0
    %975 = vmatprep.subr.mxu0 0.0
    %976 = vmatpush1.msra.mxu0 0.0
    %977 = vmatprep.subr.mxu0 0.0
    %978 = vmatpush1.msra.mxu0 0.0
    %979 = vmatprep.subr.mxu0 0.0
    %980 = vmatpush1.msra.mxu0 0.0
    %981 = vmatprep.subr.mxu0 0.0
    %982 = vmatpush1.msra.mxu0 0.0
    %983 = vmatprep.mubr.f32.mxu0 0.0
    %984 = vmatmul.mubr.f32.gmra.mrb[0].mxu0 %v917
    %v985 = vpop.f32.mrb[0].mxu0
    %v986 = vadd.f32 %v368, %v985
    %v987 = vpop.f32.mrb[0].mxu0
    %988 = vdwg.mxu0
    %v990 = vrot.slane %v986, 6
    %v992 = vadd.f32 %v358, %v990
    %v993 = vxor.u32 %v992, 2147483648
    %v994 = vmul.f32 %v993, 1.442695
    %v995 = vpow.pop %v994
    %v996 = vadd.f32 %v995, 1.0
    %v997 = vrcp.pop %v996
    %v998 = vmul.f32 1.0, %v997
    %999 = vrot.lane.b32.xlu0 %v990, 96
    %v1000 = vpop.permute.xlu0 %999
    %v1002 = vmul.f32 %v998, %v1000
    %1004 = vrot.lane.b32.xlu0 %v1002, 32
    %v1005 = vpop.permute.xlu0 %1004
    %v1007 = vadd.f32 %v358, %v1005
    %v1008 = vtanh.pop %v1007
    %v1010 = vrot.slane %v1008, 2
    %v1012 = vsub.f32 %v913, %v1010
    %v1014 = vrot.slane %v1012, 6
    %1015 = vrot.lane.b32.xlu0 %v1014, 112
    %v1016 = vpop.permute.xlu0 %1015
    %v1018 = vmul.f32 %v998, %v1016
    %1020 = vrot.lane.b32.xlu0 %v1018, 16
    %v1021 = vpop.permute.xlu0 %1020
    %v1023 = vadd.f32 %v1008, %v1021
    %v1025 = vrot.slane %v1023, 2
    %1026 = vrot.lane.b32.xlu0 %v1025, 96
    %v1027 = vpop.permute.xlu0 %1026
    %v1028 = vsel %vm370, %v1027, 0
    %1030 = vmatprep.subr.mxu0 0.0
    %1031 = vmatpush1.msra.mxu0 %v361
    %1032 = vmatprep.subr.mxu0 0.0
    %1033 = vmatpush1.msra.mxu0 %v362
    %1034 = vmatprep.subr.mxu0 0.0
    %1035 = vmatpush1.msra.mxu0 0.0
    %1036 = vmatprep.subr.mxu0 0.0
    %1037 = vmatpush1.msra.mxu0 0.0
    %1038 = vmatprep.subr.mxu0 0.0
    %1039 = vmatpush1.msra.mxu0 0.0
    %1040 = vmatprep.subr.mxu0 0.0
    %1041 = vmatpush1.msra.mxu0 0.0
    %1042 = vmatprep.subr.mxu0 0.0
    %1043 = vmatpush1.msra.mxu0 0.0
    %1044 = vmatprep.subr.mxu0 0.0
    %1045 = vmatpush1.msra.mxu0 0.0
    %1046 = vmatprep.subr.mxu0 0.0
    %1047 = vmatpush1.msra.mxu0 0.0
    %1048 = vmatprep.subr.mxu0 0.0
    %1049 = vmatpush1.msra.mxu0 0.0
    %1050 = vmatprep.subr.mxu0 0.0
    %1051 = vmatpush1.msra.mxu0 0.0
    %1052 = vmatprep.subr.mxu0 0.0
    %1053 = vmatpush1.msra.mxu0 0.0
    %1054 = vmatprep.subr.mxu0 0.0
    %1055 = vmatpush1.msra.mxu0 0.0
    %1056 = vmatprep.subr.mxu0 0.0
    %1057 = vmatpush1.msra.mxu0 0.0
    %1058 = vmatprep.subr.mxu0 0.0
    %1059 = vmatpush1.msra.mxu0 0.0
    %1060 = vmatprep.subr.mxu0 0.0
    %1061 = vmatpush1.msra.mxu0 0.0
    %1062 = vmatprep.subr.mxu0 0.0
    %1063 = vmatpush1.msra.mxu0 0.0
    %1064 = vmatprep.subr.mxu0 0.0
    %1065 = vmatpush1.msra.mxu0 0.0
    %1066 = vmatprep.subr.mxu0 0.0
    %1067 = vmatpush1.msra.mxu0 0.0
    %1068 = vmatprep.subr.mxu0 0.0
    %1069 = vmatpush1.msra.mxu0 0.0
    %1070 = vmatprep.subr.mxu0 0.0
    %1071 = vmatpush1.msra.mxu0 0.0
    %1072 = vmatprep.subr.mxu0 0.0
    %1073 = vmatpush1.msra.mxu0 0.0
    %1074 = vmatprep.subr.mxu0 0.0
    %1075 = vmatpush1.msra.mxu0 0.0
    %1076 = vmatprep.subr.mxu0 0.0
    %1077 = vmatpush1.msra.mxu0 0.0
    %1078 = vmatprep.subr.mxu0 0.0
    %1079 = vmatpush1.msra.mxu0 0.0
    %1080 = vmatprep.subr.mxu0 0.0
    %1081 = vmatpush1.msra.mxu0 0.0
    %1082 = vmatprep.subr.mxu0 0.0
    %1083 = vmatpush1.msra.mxu0 0.0
    %1084 = vmatprep.subr.mxu0 0.0
    %1085 = vmatpush1.msra.mxu0 0.0
    %1086 = vmatprep.subr.mxu0 0.0
    %1087 = vmatpush1.msra.mxu0 0.0
    %1088 = vmatprep.subr.mxu0 0.0
    %1089 = vmatpush1.msra.mxu0 0.0
    %1090 = vmatprep.subr.mxu0 0.0
    %1091 = vmatpush1.msra.mxu0 0.0
    %1092 = vmatprep.subr.mxu0 0.0
    %1093 = vmatpush1.msra.mxu0 0.0
    %1094 = vmatprep.mubr.f32.mxu0 0.0
    %1095 = vmatmul.mubr.f32.gmra.mrb[0].mxu0 %v1028
    %v1096 = vpop.f32.mrb[0].mxu0
    %v1097 = vadd.f32 %v368, %v1096
    %v1098 = vpop.f32.mrb[0].mxu0
    %1099 = vdwg.mxu0
    %v1101 = vrot.slane %v1097, 4
    %v1103 = vadd.f32 %v358, %v1101
    %v1104 = vxor.u32 %v1103, 2147483648
    %v1105 = vmul.f32 %v1104, 1.442695
    %v1106 = vpow.pop %v1105
    %v1107 = vadd.f32 %v1106, 1.0
    %v1108 = vrcp.pop %v1107
    %v1109 = vmul.f32 1.0, %v1108
    %1110 = vrot.lane.b32.xlu0 %v1101, 96
    %v1111 = vpop.permute.xlu0 %1110
    %v1113 = vmul.f32 %v1109, %v1111
    %1115 = vrot.lane.b32.xlu0 %v1113, 32
    %v1116 = vpop.permute.xlu0 %1115
    %v1118 = vadd.f32 %v358, %v1116
    %v1119 = vtanh.pop %v1118
    %v1121 = vrot.slane %v1119, 2
    %v1123 = vsub.f32 %v1023, %v1121
    %v1125 = vrot.slane %v1123, 6
    %1126 = vrot.lane.b32.xlu0 %v1125, 112
    %v1127 = vpop.permute.xlu0 %1126
    %v1129 = vmul.f32 %v1109, %v1127
    %1131 = vrot.lane.b32.xlu0 %v1129, 16
    %v1132 = vpop.permute.xlu0 %1131
    %v1134 = vadd.f32 %v1119, %v1132
    %v1136 = vrot.slane %v1134, 4
    %1137 = vrot.lane.b32.xlu0 %v1136, 96
    %v1138 = vpop.permute.xlu0 %1137
    %v1139 = vsel %vm370, %v1138, 0
    %1141 = vmatprep.subr.mxu0 0.0
    %1142 = vmatpush1.msra.mxu0 %v361
    %1143 = vmatprep.subr.mxu0 0.0
    %1144 = vmatpush1.msra.mxu0 %v362
    %1145 = vmatprep.subr.mxu0 0.0
    %1146 = vmatpush1.msra.mxu0 0.0
    %1147 = vmatprep.subr.mxu0 0.0
    %1148 = vmatpush1.msra.mxu0 0.0
    %1149 = vmatprep.subr.mxu0 0.0
    %1150 = vmatpush1.msra.mxu0 0.0
    %1151 = vmatprep.subr.mxu0 0.0
    %1152 = vmatpush1.msra.mxu0 0.0
    %1153 = vmatprep.subr.mxu0 0.0
    %1154 = vmatpush1.msra.mxu0 0.0
    %1155 = vmatprep.subr.mxu0 0.0
    %1156 = vmatpush1.msra.mxu0 0.0
    %1157 = vmatprep.subr.mxu0 0.0
    %1158 = vmatpush1.msra.mxu0 0.0
    %1159 = vmatprep.subr.mxu0 0.0
    %1160 = vmatpush1.msra.mxu0 0.0
    %1161 = vmatprep.subr.mxu0 0.0
    %1162 = vmatpush1.msra.mxu0 0.0
    %1163 = vmatprep.subr.mxu0 0.0
    %1164 = vmatpush1.msra.mxu0 0.0
    %1165 = vmatprep.subr.mxu0 0.0
    %1166 = vmatpush1.msra.mxu0 0.0
    %1167 = vmatprep.subr.mxu0 0.0
    %1168 = vmatpush1.msra.mxu0 0.0
    %1169 = vmatprep.subr.mxu0 0.0
    %1170 = vmatpush1.msra.mxu0 0.0
    %1171 = vmatprep.subr.mxu0 0.0
    %1172 = vmatpush1.msra.mxu0 0.0
    %1173 = vmatprep.subr.mxu0 0.0
    %1174 = vmatpush1.msra.mxu0 0.0
    %1175 = vmatprep.subr.mxu0 0.0
    %1176 = vmatpush1.msra.mxu0 0.0
    %1177 = vmatprep.subr.mxu0 0.0
    %1178 = vmatpush1.msra.mxu0 0.0
    %1179 = vmatprep.subr.mxu0 0.0
    %1180 = vmatpush1.msra.mxu0 0.0
    %1181 = vmatprep.subr.mxu0 0.0
    %1182 = vmatpush1.msra.mxu0 0.0
    %1183 = vmatprep.subr.mxu0 0.0
    %1184 = vmatpush1.msra.mxu0 0.0
    %1185 = vmatprep.subr.mxu0 0.0
    %1186 = vmatpush1.msra.mxu0 0.0
    %1187 = vmatprep.subr.mxu0 0.0
    %1188 = vmatpush1.msra.mxu0 0.0
    %1189 = vmatprep.subr.mxu0 0.0
    %1190 = vmatpush1.msra.mxu0 0.0
    %1191 = vmatprep.subr.mxu0 0.0
    %1192 = vmatpush1.msra.mxu0 0.0
    %1193 = vmatprep.subr.mxu0 0.0
    %1194 = vmatpush1.msra.mxu0 0.0
    %1195 = vmatprep.subr.mxu0 0.0
    %1196 = vmatpush1.msra.mxu0 0.0
    %1197 = vmatprep.subr.mxu0 0.0
    %1198 = vmatpush1.msra.mxu0 0.0
    %1199 = vmatprep.subr.mxu0 0.0
    %1200 = vmatpush1.msra.mxu0 0.0
    %1201 = vmatprep.subr.mxu0 0.0
    %1202 = vmatpush1.msra.mxu0 0.0
    %1203 = vmatprep.subr.mxu0 0.0
    %1204 = vmatpush1.msra.mxu0 0.0
    %1205 = vmatprep.mubr.f32.mxu0 0.0
    %1206 = vmatmul.mubr.f32.gmra.mrb[0].mxu0 %v1139
    %v1207 = vpop.f32.mrb[0].mxu0
    %v1208 = vadd.f32 %v368, %v1207
    %v1209 = vpop.f32.mrb[0].mxu0
    %1210 = vdwg.mxu0
    %v1212 = vrot.slane %v1208, 2
    %v1214 = vadd.f32 %v358, %v1212
    %v1215 = vxor.u32 %v1214, 2147483648
    %v1216 = vmul.f32 %v1215, 1.442695
    %v1217 = vpow.pop %v1216
    %v1218 = vadd.f32 %v1217, 1.0
    %v1219 = vrcp.pop %v1218
    %v1220 = vmul.f32 1.0, %v1219
    %1221 = vrot.lane.b32.xlu0 %v1212, 96
    %v1222 = vpop.permute.xlu0 %1221
    %v1224 = vmul.f32 %v1220, %v1222
    %1226 = vrot.lane.b32.xlu0 %v1224, 32
    %v1227 = vpop.permute.xlu0 %1226
    %v1229 = vadd.f32 %v358, %v1227
    %v1230 = vtanh.pop %v1229
    %v1232 = vrot.slane %v1230, 2
    %v1234 = vsub.f32 %v1134, %v1232
    %v1236 = vrot.slane %v1234, 6
    %1237 = vrot.lane.b32.xlu0 %v1236, 112
    %v1238 = vpop.permute.xlu0 %1237
    %v1240 = vmul.f32 %v1220, %v1238
    %1242 = vrot.lane.b32.xlu0 %v1240, 16
    %v1243 = vpop.permute.xlu0 %1242
    %v1245 = vadd.f32 %v1230, %v1243
    %vm1246 = vcmask 1041408
    %v1247 = vsel %vm1246, %v472, %v582
    %v1248 = vsel %vm91, %v1247, %v693
    %vm1249 = vcmask 1045504
    %v1250 = vsel %vm1249, %v1248, %v804
    %v1251 = vsel %vm1246, %v913, %v1023
    %v1252 = vsel %vm91, %v1251, %v1134
    %v1253 = vsel %vm1249, %v1252, %v1245
    %v1254 = vld [vmem:[%s9] sm:$0xff]
    %v1255 = vld [vmem:[%s9 + $0x8] sm:$0xff]
    %v1256 = vld [vmem:[%s10] sm:$0x1]
    %v1258 = vlaneseq
    %v1259 = vshrl.u32 %v1258, 7
    %v1260 = vsub.s32 0, %v1259
    %v1261 = vrot.slane %v1256, %v1260
    %1265 = vrot.lane.b32.xlu0 %v1250, 96
    %v1266 = vpop.permute.xlu0 %1265
    %1267 = vrot.lane.b32.xlu0 %v1253, 96
    %v1268 = vpop.permute.xlu0 %1267
    %v1269 = vsel %vm370, %v1266, 0
    %v1271 = vsel %vm370, %v1268, 0
    %1273 = vmatprep.subr.mxu0 0.0
    %1274 = vmatpush1.msra.mxu0 %v1254
    %1275 = vmatprep.subr.mxu0 0.0
    %1276 = vmatpush1.msra.mxu0 %v1255
    %1277 = vmatprep.subr.mxu0 0.0
    %1278 = vmatpush1.msra.mxu0 0.0
    %1279 = vmatprep.subr.mxu0 0.0
    %1280 = vmatpush1.msra.mxu0 0.0
    %1281 = vmatprep.subr.mxu0 0.0
    %1282 = vmatpush1.msra.mxu0 0.0
    %1283 = vmatprep.subr.mxu0 0.0
    %1284 = vmatpush1.msra.mxu0 0.0
    %1285 = vmatprep.subr.mxu0 0.0
    %1286 = vmatpush1.msra.mxu0 0.0
    %1287 = vmatprep.subr.mxu0 0.0
    %1288 = vmatpush1.msra.mxu0 0.0
    %1289 = vmatprep.subr.mxu0 0.0
    %1290 = vmatpush1.msra.mxu0 0.0
    %1291 = vmatprep.subr.mxu0 0.0
    %1292 = vmatpush1.msra.mxu0 0.0
    %1293 = vmatprep.subr.mxu0 0.0
    %1294 = vmatpush1.msra.mxu0 0.0
    %1295 = vmatprep.subr.mxu0 0.0
    %1296 = vmatpush1.msra.mxu0 0.0
    %1297 = vmatprep.subr.mxu0 0.0
    %1298 = vmatpush1.msra.mxu0 0.0
    %1299 = vmatprep.subr.mxu0 0.0
    %1300 = vmatpush1.msra.mxu0 0.0
    %1301 = vmatprep.subr.mxu0 0.0
    %1302 = vmatpush1.msra.mxu0 0.0
    %1303 = vmatprep.subr.mxu0 0.0
    %1304 = vmatpush1.msra.mxu0 0.0
    %1305 = vmatprep.subr.mxu0 0.0
    %1306 = vmatpush1.msra.mxu0 0.0
    %1307 = vmatprep.subr.mxu0 0.0
    %1308 = vmatpush1.msra.mxu0 0.0
    %1309 = vmatprep.subr.mxu0 0.0
    %1310 = vmatpush1.msra.mxu0 0.0
    %1311 = vmatprep.subr.mxu0 0.0
    %1312 = vmatpush1.msra.mxu0 0.0
    %1313 = vmatprep.subr.mxu0 0.0
    %1314 = vmatpush1.msra.mxu0 0.0
    %1315 = vmatprep.subr.mxu0 0.0
    %1316 = vmatpush1.msra.mxu0 0.0
    %1317 = vmatprep.subr.mxu0 0.0
    %1318 = vmatpush1.msra.mxu0 0.0
    %1319 = vmatprep.subr.mxu0 0.0
    %1320 = vmatpush1.msra.mxu0 0.0
    %1321 = vmatprep.subr.mxu0 0.0
    %1322 = vmatpush1.msra.mxu0 0.0
    %1323 = vmatprep.subr.mxu0 0.0
    %1324 = vmatpush1.msra.mxu0 0.0
    %1325 = vmatprep.subr.mxu0 0.0
    %1326 = vmatpush1.msra.mxu0 0.0
    %1327 = vmatprep.subr.mxu0 0.0
    %1328 = vmatpush1.msra.mxu0 0.0
    %1329 = vmatprep.subr.mxu0 0.0
    %1330 = vmatpush1.msra.mxu0 0.0
    %1331 = vmatprep.subr.mxu0 0.0
    %1332 = vmatpush1.msra.mxu0 0.0
    %1333 = vmatprep.subr.mxu0 0.0
    %1334 = vmatpush1.msra.mxu0 0.0
    %1335 = vmatprep.subr.mxu0 0.0
    %1336 = vmatpush1.msra.mxu0 0.0
    %1337 = vmatprep.mubr.f32.mxu0 0.0
    %1338 = vmatmul.mubr.f32.gmra.mrb[0].mxu0 %v1269
    %v1339 = vpop.f32.mrb[0].mxu0
    %v1340 = vadd.f32 %v1261, %v1339
    %v1341 = vpop.f32.mrb[0].mxu0
    %1342 = vmatprep.mubr.f32.mxu0 0.0
    %1343 = vmatmul.mubr.f32.gmra.mrb[0].mxu0 %v1271
    %v1344 = vpop.f32.mrb[0].mxu0
    %v1345 = vadd.f32 %v1261, %v1344
    %v1346 = vpop.f32.mrb[0].mxu0
    %1347 = vdwg.mxu0
    %1348 = vst [vmem:[#allocation8] sm:$0xff] %v1340
    %1349 = vst [vmem:[#allocation8 + $0x8] sm:$0xff] %v1345
    // Predicated region
    $region58: #{tpu_custom_call.1} parent=1 // pred_check
      _
    $region59: #{tpu_custom_call.1} parent=1 // pred_check_branch
      %1351 = sbr.rel (0) target = $region61
    $region60: #{tpu_custom_call.1} parent=1 // pred_region
      %s1353 = ssub.s32 256, 256
      %1354 = vsyncadd [#allocation4], %s1353
      %s1355 = sshll.u32 [#allocation8], 4
      %s1356 = int_to_ptr.vmem [resolvable:$true] %s1355
      %1361 = dma.vmem_to_hbm [thread:$0]  %s1356, 256, %s11, [#allocation4], 128, 128, 8
    $region61: #{tpu_custom_call.1} parent=1 // pred_fallthru
      _
    // Predicated region
    $region62: #{tpu_custom_call.1} parent=1 // pred_check
      _
    $region63: #{tpu_custom_call.1} parent=1 // pred_check_branch
      %1363 = sbr.rel (0) target = $region65
    $region64: #{tpu_custom_call.1} parent=1 // pred_region
      %1364 = dma.done [#allocation4], 256
    $region65: #{tpu_custom_call.1} parent=1 // pred_fallthru
      _
    %1365 = vsyncpa [#allocation3], 1
    %1366 = vsyncpa [#allocation6], 1
    %1367 = vsyncpa [#allocation4], 1

</llo_original>
